<compile_context>
chip_gen: v7x
topology: tpu7x:2x2x1
jax: 0.10.0
libtpu: 0.0.40
codegen_flags: <defaults>
</compile_context>

<pallas_src>
import jax
import jax.numpy as jnp
from jax.experimental import pallas as pl
from jax.experimental.pallas import tpu as pltpu

_LANE = 128


def _physical_vmem_bytes():
    """Best-effort per-core VMEM capacity; conservative fallback (v7x = 64 MiB)."""
    try:
        return int(pltpu.get_tpu_info().vmem_capacity_bytes)
    except Exception:
        return 64 * 1024 * 1024


def _fused_features_kernel(p1_ref, w1_ref, b1_ref, w2_ref, b2_ref, o_ref, pad_ref):
    """Fused conv->pool->ReLU x2 for one block of nb images.

      p1_ref : (nb, H*W, K1p)         lane-dense stage-1 im2col (built in wrapper)
      w1_ref : (K1p, C1)              stage-1 weights (K zero-padded to 128)
      b1_ref : (1, C1)
      w2_ref : (9*C1, Cp)             stage-2 im2col weights (Cout padded to 128)
      b2_ref : (1, Cp)
      o_ref  : (nb, (H//4)*(W//4), Cp) lane-dense output slab
      pad_ref: (nb, H//2+2, W//2+2, C1) VMEM scratch holding the SAME halo
    """
    nb, H1p2, W1p2, C1 = pad_ref.shape
    H1, W1 = H1p2 - 2, W1p2 - 2
    H, W = 2 * H1, 2 * W1
    H2, W2 = H1 // 2, W1 // 2
    K1p = p1_ref.shape[-1]
    Cp = w2_ref.shape[-1]

    # ---------------- stage 1: conv1 as one deep-K, lane-dense matmul ----------------
    y1 = jnp.dot(p1_ref[...].reshape(nb * H * W, K1p), w1_ref[...],
                 preferred_element_type=jnp.float32)
    y1 = (y1 + b1_ref[...]).reshape(nb, H1, 2, W, C1)
    # 2x2 stride-2 max-pool: H first (cheap whole-row selects), then W; then ReLU.
    y1 = jnp.maximum(y1[:, :, 0], y1[:, :, 1])                      # (nb, H1, W, C1)
    y1 = y1.reshape(nb, H1, W1, 2, C1)
    a1 = jnp.maximum(jnp.maximum(y1[:, :, :, 0], y1[:, :, :, 1]), 0.0)

    # ---------------- SAME halo via zeroed VMEM scratch (no concat copies) ----------------
    pad_ref[...] = jnp.zeros_like(pad_ref)            # halo = zeros (SAME padding)
    pad_ref[:, 1:H1 + 1, 1:W1 + 1, :] = a1.astype(pad_ref.dtype)

    # ---------------- stage 2: conv2 as one deep-K (9*C1) im2col matmul ----------------
    taps = [pad_ref[:, kh:kh + H1, kw:kw + W1, :]      # (nb, H1, W1, C1) windowed loads
            for kh in range(3) for kw in range(3)]
    p2 = jnp.concatenate(taps, axis=-1).reshape(nb * H1 * W1, 9 * C1)
    y2 = jnp.dot(p2, w2_ref[...], preferred_element_type=jnp.float32)
    y2 = (y2 + b2_ref[...]).reshape(nb, H2, 2, W1, Cp)
    y2 = jnp.maximum(y2[:, :, 0], y2[:, :, 1])                      # pool H
    y2 = y2.reshape(nb, H2, W2, 2, Cp)
    a2 = jnp.maximum(jnp.maximum(y2[:, :, :, 0], y2[:, :, :, 1]), 0.0)
    o_ref[...] = a2.reshape(nb, H2 * W2, Cp).astype(o_ref.dtype)


def features_detector_pallas(x_nchw, w1, b1, w2, b2, *,
                             batch_block=None, compute_dtype=jnp.float32):
    """JAX/Pallas port of FeaturesDector.forward (NCHW in, NCHW out).

    compute_dtype=jnp.bfloat16 gives ~2-3x MXU throughput on v6e/v7x at the
    cost of bf16 operand precision (relax validation tolerance accordingly).
    """
    N, Cin, H, W = x_nchw.shape
    C1 = w1.shape[0]                 # 32
    Cout = w2.shape[0]
    assert H % 4 == 0 and W % 4 == 0, "spatial dims must be divisible by 4"
    H1, W1, H2, W2 = H // 2, W // 2, H // 4, W // 4
    K1 = 9 * Cin
    K1p = max(_LANE, -(-K1 // _LANE) * _LANE)        # lane-dense stage-1 K
    Cp = -(-Cout // _LANE) * _LANE                   # lane-dense output channels

    # ---- glue: NCHW -> NHWC, wrapper-side stage-1 im2col, OIHW -> im2col weights ----
    x = jnp.transpose(x_nchw, (0, 2, 3, 1))
    xpad = jnp.pad(x, ((0, 0), (1, 1), (1, 1), (0, 0)))
    taps = [xpad[:, kh:kh + H, kw:kw + W, :] for kh in range(3) for kw in range(3)]
    p1 = jnp.concatenate(taps, axis=-1).reshape(N, H * W, K1)
    p1 = jnp.pad(p1, ((0, 0), (0, 0), (0, K1p - K1))).astype(compute_dtype)

    w1m = jnp.transpose(w1, (2, 3, 1, 0)).reshape(K1, C1)          # (kh, kw, ci) rows
    w1m = jnp.pad(w1m, ((0, K1p - K1), (0, 0))).astype(compute_dtype)
    b1m = b1.reshape(1, C1).astype(jnp.float32)
    w2m = jnp.transpose(w2, (2, 3, 1, 0)).reshape(9 * C1, Cout)
    w2m = jnp.pad(w2m, ((0, 0), (0, Cp - Cout))).astype(compute_dtype)
    b2m = jnp.pad(b2, (0, Cp - Cout)).reshape(1, Cp).astype(jnp.float32)

    # ---- VMEM sizing: count double-buffered blocks + 128-lane padding of temps ----
    isz = jnp.dtype(compute_dtype).itemsize
    r8 = lambda v: -(-v // 8) * 8
    rl = lambda v: -(-v // _LANE) * _LANE
    per_img = (
        2 * H * W * K1p * isz                        # stage-1 im2col block (x2 dbl-buf)
        + 2 * H2 * W2 * Cp * 4                       # output block (x2 dbl-buf)
        + H * W * rl(C1) * 4                         # stage-1 conv out (lane-padded)
        + 2 * H1 * W1 * rl(C1) * 4                   # pooled / ReLU'd a1 temporaries
        + (H1 + 2) * r8(W1 + 2) * rl(C1) * isz       # halo scratch (tile-padded)
        + H1 * W1 * rl(9 * C1) * isz                 # stage-2 im2col
        + 2 * H1 * W1 * Cp * 4                       # stage-2 conv out + pooled
    )
    fixed = 2 * (K1p * C1 + 9 * C1 * Cp) * isz + 2 * (C1 + Cp) * 4 + (1 << 20)

    phys_vmem = _physical_vmem_bytes()
    budget = min(20 << 20, phys_vmem // 4)           # conservative live-VMEM target

    if batch_block is None:
        # Keep >= 2 grid steps whenever N >= 2: feeds both v7x TensorCores
        # ("parallel" axis) and keeps input-DMA/compute overlap alive.
        nb_cap = max(1, N // 2)
        nb = 1
        for cand in range(min(nb_cap, N), 0, -1):
            if N % cand == 0 and fixed + per_img * cand <= budget:
                nb = cand
                break
    else:
        nb = batch_block
    need = fixed + per_img * nb
    vmem_limit = int(min(max(2 * need, 16 << 20), max(16 << 20, phys_vmem // 2)))

    out = pl.pallas_call(
        _fused_features_kernel,
        out_shape=jax.ShapeDtypeStruct((N, H2 * W2, Cp), jnp.float32),
        grid=(N // nb,),
        in_specs=[
            pl.BlockSpec((nb, H * W, K1p), lambda i: (i, 0, 0)),
            pl.BlockSpec((K1p, C1), lambda i: (0, 0)),
            pl.BlockSpec((1, C1), lambda i: (0, 0)),
            pl.BlockSpec((9 * C1, Cp), lambda i: (0, 0)),
            pl.BlockSpec((1, Cp), lambda i: (0, 0)),
        ],
        out_specs=pl.BlockSpec((nb, H2 * W2, Cp), lambda i: (i, 0, 0)),
        scratch_shapes=[pltpu.VMEM((nb, H1 + 2, W1 + 2, C1), compute_dtype)],
        compiler_params=pltpu.CompilerParams(
            dimension_semantics=("parallel",),        # batch blocks are independent
            vmem_limit_bytes=vmem_limit),
    )(p1, w1m, b1m, w2m, b2m)

    out = out[..., :Cout].reshape(N, H2, W2, Cout)    # drop lane padding
    return jnp.transpose(out, (0, 3, 1, 2))           # NHWC -> NCHW


features_detector = jax.jit(features_detector_pallas,
                            static_argnames=("batch_block", "compute_dtype"))


def _reference(x_nchw, w1, b1, w2, b2):
    # Pure-JAX reference (same math as the PyTorch module) for validation.
    def stage(x, w, b):
        y = jax.lax.conv_general_dilated(
            x, w, window_strides=(1, 1), padding="SAME",
            dimension_numbers=("NCHW", "OIHW", "NCHW"))
        y = y + b[None, :, None, None]
        y = jax.lax.reduce_window(y, -jnp.inf, jax.lax.max,
                                  (1, 1, 2, 2), (1, 1, 2, 2), "VALID")
        return jnp.maximum(y, 0.0)
    return stage(stage(x_nchw, w1, b1), w2, b2)


if __name__ == "__main__":
    N, Cin, H, W = 2, 4, 16, 16   # small NCHW input consistent with the module
    Cout = 8                      # out_channels of FeaturesDector

    key = jax.random.PRNGKey(0)
    k1, k2, k3, k4, k5 = jax.random.split(key, 5)
    x = jax.random.normal(k1, (N, Cin, H, W), jnp.float32)
    # Deterministic synthetic params in PyTorch Conv2d layout (O, I, kH, kW).
    w1 = 0.1 * jax.random.normal(k2, (32, Cin, 3, 3), jnp.float32)
    b1 = 0.1 * jax.random.normal(k3, (32,), jnp.float32)
    w2 = 0.1 * jax.random.normal(k4, (Cout, 32, 3, 3), jnp.float32)
    b2 = 0.1 * jax.random.normal(k5, (Cout,), jnp.float32)

    out = features_detector(x, w1, b1, w2, b2)
    out = jax.block_until_ready(out)
    assert out.shape == (N, Cout, H // 4, W // 4), out.shape

    ref = _reference(x, w1, b1, w2, b2)
    assert jnp.allclose(out, ref, atol=1e-3, rtol=1e-3), \
        float(jnp.max(jnp.abs(out - ref)))

    print("KERNEL_OK")
</pallas_src>

<mosaic_0001>
module attributes {stable_mosaic.version = 11 : i64} {
  func.func @_fused_features_kernel(%arg0: i32, %arg1: memref<1x256x128xf32, #tpu.memory_space<vmem>>, %arg2: memref<128x32xf32, #tpu.memory_space<vmem>>, %arg3: memref<1x32xf32, #tpu.memory_space<vmem>>, %arg4: memref<288x128xf32, #tpu.memory_space<vmem>>, %arg5: memref<1x128xf32, #tpu.memory_space<vmem>>, %arg6: memref<1x16x128xf32, #tpu.memory_space<vmem>>, %arg7: memref<1x10x10x32xf32, #tpu.memory_space<vmem>>) attributes {dimension_semantics = [#tpu.dimension_semantics<parallel>], iteration_bounds = array<i64: 2>, scalar_prefetch = 0 : i64, scratch_operands = 1 : i64, tpu.core_type = #tpu.core_type<tc>, window_params = [{transform_indices = @transform_0, window_bounds = array<i64: 1, 256, 128>}, {pipeline_mode = #tpu.pipeline_mode<synchronous>, transform_indices = @transform_1, window_bounds = array<i64: 128, 32>}, {pipeline_mode = #tpu.pipeline_mode<synchronous>, transform_indices = @transform_2, window_bounds = array<i64: 1, 32>}, {pipeline_mode = #tpu.pipeline_mode<synchronous>, transform_indices = @transform_3, window_bounds = array<i64: 288, 128>}, {pipeline_mode = #tpu.pipeline_mode<synchronous>, transform_indices = @transform_4, window_bounds = array<i64: 1, 128>}, {transform_indices = @transform_5, window_bounds = array<i64: 1, 16, 128>}]} {
    %c0 = arith.constant 0 : index
    %c0_0 = arith.constant 0 : index
    %c0_1 = arith.constant 0 : index
    %0 = vector.load %arg1[%c0, %c0_0, %c0_1] : memref<1x256x128xf32, #tpu.memory_space<vmem>>, vector<1x256x128xf32>
    %1 = vector.shape_cast %0 : vector<1x256x128xf32> to vector<256x128xf32>
    %c0_2 = arith.constant 0 : index
    %c0_3 = arith.constant 0 : index
    %2 = vector.load %arg2[%c0_2, %c0_3] : memref<128x32xf32, #tpu.memory_space<vmem>>, vector<128x32xf32>
    %cst = arith.constant dense<0.000000e+00> : vector<256x32xf32>
    %3 = tpu.matmul %1, %2, %cst {dimension_numbers = #tpu.dot_dimension_numbers<[1], [0], [0], [1], [0, 0, 1, 1], [], []>} : vector<256x128xf32>, vector<128x32xf32>, vector<256x32xf32> -> vector<256x32xf32>
    %c0_4 = arith.constant 0 : index
    %c0_5 = arith.constant 0 : index
    %4 = vector.load %arg3[%c0_4, %c0_5] : memref<1x32xf32, #tpu.memory_space<vmem>>, vector<1x32xf32>
    %5 = vector.broadcast %4 : vector<1x32xf32> to vector<256x32xf32>
    %6 = arith.addf %3, %5 : vector<256x32xf32>
    %7 = vector.shape_cast %6 : vector<256x32xf32> to vector<1x8x2x16x32xf32>
    %8 = vector.extract_strided_slice %7 {offsets = [0, 0, 0, 0, 0], sizes = [1, 8, 1, 16, 32], strides = [1, 1, 1, 1, 1]} : vector<1x8x2x16x32xf32> to vector<1x8x1x16x32xf32>
    %9 = vector.shape_cast %8 : vector<1x8x1x16x32xf32> to vector<1x8x16x32xf32>
    %10 = vector.extract_strided_slice %7 {offsets = [0, 0, 1, 0, 0], sizes = [1, 8, 1, 16, 32], strides = [1, 1, 1, 1, 1]} : vector<1x8x2x16x32xf32> to vector<1x8x1x16x32xf32>
    %11 = vector.shape_cast %10 : vector<1x8x1x16x32xf32> to vector<1x8x16x32xf32>
    %12 = arith.maximumf %9, %11 : vector<1x8x16x32xf32>
    %13 = vector.shape_cast %12 : vector<1x8x16x32xf32> to vector<1x8x8x2x32xf32>
    %14 = vector.extract_strided_slice %13 {offsets = [0, 0, 0, 0, 0], sizes = [1, 8, 8, 1, 32], strides = [1, 1, 1, 1, 1]} : vector<1x8x8x2x32xf32> to vector<1x8x8x1x32xf32>
    %15 = vector.shape_cast %14 : vector<1x8x8x1x32xf32> to vector<1x8x8x32xf32>
    %16 = vector.extract_strided_slice %13 {offsets = [0, 0, 0, 1, 0], sizes = [1, 8, 8, 1, 32], strides = [1, 1, 1, 1, 1]} : vector<1x8x8x2x32xf32> to vector<1x8x8x1x32xf32>
    %17 = vector.shape_cast %16 : vector<1x8x8x1x32xf32> to vector<1x8x8x32xf32>
    %18 = arith.maximumf %15, %17 : vector<1x8x8x32xf32>
    %cst_6 = arith.constant 0.000000e+00 : f32
    %19 = vector.broadcast %cst_6 : f32 to vector<1x8x8x32xf32>
    %20 = arith.maximumf %18, %19 : vector<1x8x8x32xf32>
    %cst_7 = arith.constant 0.000000e+00 : f32
    %21 = vector.broadcast %cst_7 : f32 to vector<1x10x10x32xf32>
    %c0_8 = arith.constant 0 : index
    %c0_9 = arith.constant 0 : index
    %c0_10 = arith.constant 0 : index
    %c0_11 = arith.constant 0 : index
    %22 = vector.load %arg7[%c0_8, %c0_9, %c0_10, %c0_11] : memref<1x10x10x32xf32, #tpu.memory_space<vmem>>, vector<1x10x10x32xf32>
    tpu.vector_store %arg7[%c0_8, %c0_9, %c0_10, %c0_11], %21 {strides = array<i32>} : memref<1x10x10x32xf32, #tpu.memory_space<vmem>>, vector<1x10x10x32xf32>,
    %c0_12 = arith.constant 0 : index
    %c1 = arith.constant 1 : index
    %c1_13 = arith.constant 1 : index
    %c0_14 = arith.constant 0 : index
    %23 = vector.load %arg7[%c0_12, %c1, %c1_13, %c0_14] : memref<1x10x10x32xf32, #tpu.memory_space<vmem>>, vector<1x8x8x32xf32>
    tpu.vector_store %arg7[%c0_12, %c1, %c1_13, %c0_14], %20 {strides = array<i32>} : memref<1x10x10x32xf32, #tpu.memory_space<vmem>>, vector<1x8x8x32xf32>,
    %c0_15 = arith.constant 0 : index
    %c0_16 = arith.constant 0 : index
    %c0_17 = arith.constant 0 : index
    %c0_18 = arith.constant 0 : index
    %24 = vector.load %arg7[%c0_15, %c0_16, %c0_17, %c0_18] : memref<1x10x10x32xf32, #tpu.memory_space<vmem>>, vector<1x8x8x32xf32>
    %c0_19 = arith.constant 0 : index
    %c0_20 = arith.constant 0 : index
    %c1_21 = arith.constant 1 : index
    %c0_22 = arith.constant 0 : index
    %25 = vector.load %arg7[%c0_19, %c0_20, %c1_21, %c0_22] : memref<1x10x10x32xf32, #tpu.memory_space<vmem>>, vector<1x8x8x32xf32>
    %c0_23 = arith.constant 0 : index
    %c0_24 = arith.constant 0 : index
    %c2 = arith.constant 2 : index
    %c0_25 = arith.constant 0 : index
    %26 = vector.load %arg7[%c0_23, %c0_24, %c2, %c0_25] : memref<1x10x10x32xf32, #tpu.memory_space<vmem>>, vector<1x8x8x32xf32>
    %c0_26 = arith.constant 0 : index
    %c1_27 = arith.constant 1 : index
    %c0_28 = arith.constant 0 : index
    %c0_29 = arith.constant 0 : index
    %27 = vector.load %arg7[%c0_26, %c1_27, %c0_28, %c0_29] : memref<1x10x10x32xf32, #tpu.memory_space<vmem>>, vector<1x8x8x32xf32>
    %c0_30 = arith.constant 0 : index
    %c1_31 = arith.constant 1 : index
    %c1_32 = arith.constant 1 : index
    %c0_33 = arith.constant 0 : index
    %28 = vector.load %arg7[%c0_30, %c1_31, %c1_32, %c0_33] : memref<1x10x10x32xf32, #tpu.memory_space<vmem>>, vector<1x8x8x32xf32>
    %c0_34 = arith.constant 0 : index
    %c1_35 = arith.constant 1 : index
    %c2_36 = arith.constant 2 : index
    %c0_37 = arith.constant 0 : index
    %29 = vector.load %arg7[%c0_34, %c1_35, %c2_36, %c0_37] : memref<1x10x10x32xf32, #tpu.memory_space<vmem>>, vector<1x8x8x32xf32>
    %c0_38 = arith.constant 0 : index
    %c2_39 = arith.constant 2 : index
    %c0_40 = arith.constant 0 : index
    %c0_41 = arith.constant 0 : index
    %30 = vector.load %arg7[%c0_38, %c2_39, %c0_40, %c0_41] : memref<1x10x10x32xf32, #tpu.memory_space<vmem>>, vector<1x8x8x32xf32>
    %c0_42 = arith.constant 0 : index
    %c2_43 = arith.constant 2 : index
    %c1_44 = arith.constant 1 : index
    %c0_45 = arith.constant 0 : index
    %31 = vector.load %arg7[%c0_42, %c2_43, %c1_44, %c0_45] : memref<1x10x10x32xf32, #tpu.memory_space<vmem>>, vector<1x8x8x32xf32>
    %c0_46 = arith.constant 0 : index
    %c2_47 = arith.constant 2 : index
    %c2_48 = arith.constant 2 : index
    %c0_49 = arith.constant 0 : index
    %32 = vector.load %arg7[%c0_46, %c2_47, %c2_48, %c0_49] : memref<1x10x10x32xf32, #tpu.memory_space<vmem>>, vector<1x8x8x32xf32>
    %33 = tpu.concatenate %24, %25, %26, %27, %28, %29, %30, %31, %32 in 3 : vector<1x8x8x32xf32>, vector<1x8x8x32xf32>, vector<1x8x8x32xf32>, vector<1x8x8x32xf32>, vector<1x8x8x32xf32>, vector<1x8x8x32xf32>, vector<1x8x8x32xf32>, vector<1x8x8x32xf32>, vector<1x8x8x32xf32> -> vector<1x8x8x288xf32>
    %34 = vector.shape_cast %33 : vector<1x8x8x288xf32> to vector<64x288xf32>
    %c0_50 = arith.constant 0 : index
    %c0_51 = arith.constant 0 : index
    %35 = vector.load %arg4[%c0_50, %c0_51] : memref<288x128xf32, #tpu.memory_space<vmem>>, vector<288x128xf32>
    %cst_52 = arith.constant dense<0.000000e+00> : vector<64x128xf32>
    %36 = tpu.matmul %34, %35, %cst_52 {dimension_numbers = #tpu.dot_dimension_numbers<[1], [0], [0], [1], [0, 0, 1, 1], [], []>} : vector<64x288xf32>, vector<288x128xf32>, vector<64x128xf32> -> vector<64x128xf32>
    %c0_53 = arith.constant 0 : index
    %c0_54 = arith.constant 0 : index
    %37 = vector.load %arg5[%c0_53, %c0_54] : memref<1x128xf32, #tpu.memory_space<vmem>>, vector<1x128xf32>
    %38 = vector.broadcast %37 : vector<1x128xf32> to vector<64x128xf32>
    %39 = arith.addf %36, %38 : vector<64x128xf32>
    %40 = vector.shape_cast %39 : vector<64x128xf32> to vector<1x4x2x8x128xf32>
    %41 = vector.extract_strided_slice %40 {offsets = [0, 0, 0, 0, 0], sizes = [1, 4, 1, 8, 128], strides = [1, 1, 1, 1, 1]} : vector<1x4x2x8x128xf32> to vector<1x4x1x8x128xf32>
    %42 = vector.shape_cast %41 : vector<1x4x1x8x128xf32> to vector<1x4x8x128xf32>
    %43 = vector.extract_strided_slice %40 {offsets = [0, 0, 1, 0, 0], sizes = [1, 4, 1, 8, 128], strides = [1, 1, 1, 1, 1]} : vector<1x4x2x8x128xf32> to vector<1x4x1x8x128xf32>
    %44 = vector.shape_cast %43 : vector<1x4x1x8x128xf32> to vector<1x4x8x128xf32>
    %45 = arith.maximumf %42, %44 : vector<1x4x8x128xf32>
    %46 = vector.shape_cast %45 : vector<1x4x8x128xf32> to vector<1x4x4x2x128xf32>
    %47 = vector.extract_strided_slice %46 {offsets = [0, 0, 0, 0, 0], sizes = [1, 4, 4, 1, 128], strides = [1, 1, 1, 1, 1]} : vector<1x4x4x2x128xf32> to vector<1x4x4x1x128xf32>
    %48 = vector.shape_cast %47 : vector<1x4x4x1x128xf32> to vector<1x4x4x128xf32>
    %49 = vector.extract_strided_slice %46 {offsets = [0, 0, 0, 1, 0], sizes = [1, 4, 4, 1, 128], strides = [1, 1, 1, 1, 1]} : vector<1x4x4x2x128xf32> to vector<1x4x4x1x128xf32>
    %50 = vector.shape_cast %49 : vector<1x4x4x1x128xf32> to vector<1x4x4x128xf32>
    %51 = arith.maximumf %48, %50 : vector<1x4x4x128xf32>
    %cst_55 = arith.constant 0.000000e+00 : f32
    %52 = vector.broadcast %cst_55 : f32 to vector<1x4x4x128xf32>
    %53 = arith.maximumf %51, %52 : vector<1x4x4x128xf32>
    %54 = vector.shape_cast %53 : vector<1x4x4x128xf32> to vector<1x16x128xf32>
    %c0_56 = arith.constant 0 : index
    %c0_57 = arith.constant 0 : index
    %c0_58 = arith.constant 0 : index
    %55 = vector.load %arg6[%c0_56, %c0_57, %c0_58] : memref<1x16x128xf32, #tpu.memory_space<vmem>>, vector<1x16x128xf32>
    tpu.vector_store %arg6[%c0_56, %c0_57, %c0_58], %54 {strides = array<i32>} : memref<1x16x128xf32, #tpu.memory_space<vmem>>, vector<1x16x128xf32>,
    return
  }
  func.func @transform_0(%arg0: i32) -> (i32, i32, i32) {
    %c0_i32 = arith.constant 0 : i32
    %c0_i32_0 = arith.constant 0 : i32
    %c0_i32_1 = arith.constant 0 : i32
    return %arg0, %c0_i32, %c0_i32_0 : i32, i32, i32
  }
  func.func @transform_1(%arg0: i32) -> (i32, i32) {
    %c0_i32 = arith.constant 0 : i32
    %c0_i32_0 = arith.constant 0 : i32
    %c0_i32_1 = arith.constant 0 : i32
    return %c0_i32, %c0_i32_0 : i32, i32
  }
  func.func @transform_2(%arg0: i32) -> (i32, i32) {
    %c0_i32 = arith.constant 0 : i32
    %c0_i32_0 = arith.constant 0 : i32
    %c0_i32_1 = arith.constant 0 : i32
    return %c0_i32, %c0_i32_0 : i32, i32
  }
  func.func @transform_3(%arg0: i32) -> (i32, i32) {
    %c0_i32 = arith.constant 0 : i32
    %c0_i32_0 = arith.constant 0 : i32
    %c0_i32_1 = arith.constant 0 : i32
    return %c0_i32, %c0_i32_0 : i32, i32
  }
  func.func @transform_4(%arg0: i32) -> (i32, i32) {
    %c0_i32 = arith.constant 0 : i32
    %c0_i32_0 = arith.constant 0 : i32
    %c0_i32_1 = arith.constant 0 : i32
    return %c0_i32, %c0_i32_0 : i32, i32
  }
  func.func @transform_5(%arg0: i32) -> (i32, i32, i32) {
    %c0_i32 = arith.constant 0 : i32
    %c0_i32_0 = arith.constant 0 : i32
    %c0_i32_1 = arith.constant 0 : i32
    return %arg0, %c0_i32, %c0_i32_0 : i32, i32, i32
  }
}

</mosaic_0001>

<llo_original>
// kernel: features_detector_pallas.1
$region0: #{features_detector_pallas.1}
  #allocation0 [shape = 'u32[]', space=smem, size = 0x4, offset = 0x4, fixed_abs, tag = 'smem constant byte address 0x4 - core index']
  #allocation1 [shape = 'u32[144,128]{1,0:T(1,128)}', space=vmem, size = 0x12000, scoped, tag = 'internal scratch']
  #allocation2 [shape = 'f32[1,10,10,32]{3,2,1,0:T(8,128)}', space=vmem, size = 0x14000, scoped, tag = 'scratch operand']
  %s0 = inlined_call_operand.vmem [shape: f32[2,256,128], index: 0, kind: input, shape index: {}]
  %s1 = inlined_call_operand.vmem [shape: f32[128,32], index: 1, kind: input, shape index: {}]
  %s2 = inlined_call_operand.vmem [shape: f32[1,32], index: 2, kind: input, shape index: {}]
  %s3 = inlined_call_operand.vmem [shape: f32[288,128], index: 3, kind: input, shape index: {}]
  %s4 = inlined_call_operand.vmem [shape: f32[1,128], index: 4, kind: input, shape index: {}]
  %s5 = inlined_call_operand.hbm [shape: f32[2,16,128], index: 5, kind: output, shape index: {}]
  %s6 = sld [smem:[#allocation0]]
  $region53: #{features_detector_pallas.1} parent=0
    _
  %s8 = ssub.s32 1, %s6
  %s9 = scalar_select 0, %s8, %s6
  $region1: #{features_detector_pallas.1} parent=0
    #allocation3 [shape = 'u8[16384]{0}', space=vmem, size = 0x4000, scoped, tag = 'output window, operand 0']
    #allocation4 [shape = 's32[2]{0}', space=sflag, size = 0x8, scoped, tag = 'scoped memory for features_detector_pallas.1']
    %10 = vsyncpa [#allocation4], 0
    %s11 = scalar_lea.sflag [#allocation4], 1
    %12 = vsyncpa %s11, 0
    loop: start=0, step=1, limit=4
    $region2: #{features_detector_pallas.1} parent=1 // loop_pre_header
      _
    $region3: #{features_detector_pallas.1} parent=1 // loop_header
      %s14 = sphi 0, %s18
      %p15 = scmp.ge.s32.totalorder %s14, 4
      %s24 = sphi 0, %s26
      %s27 = sphi 0, %s24
      %s28 = sphi 0, %s27
      %s44 = sphi 0, %s28
      %s48 = sphi 0, %s48
      %s50 = sphi 0, %s48
      %s51 = sphi 0, %s50
      %s65 = sphi 0, %s51
      %s69 = sphi 0, %s69
      %s71 = sphi 0, %s69
      %s72 = sphi 0, %s71
      %s86 = sphi 0, %s72
      %s90 = sphi 0, %s90
      %s92 = sphi 0, %s90
      %s93 = sphi 0, %s92
      %s107 = sphi 0, %s93
      %s111 = sphi 0, %s111
      %s113 = sphi 0, %s111
      %s114 = sphi 0, %s113
      %s128 = sphi 0, %s114
      %s134 = sphi 0, %s136
      %s137 = sphi 0, %s134
      %s138 = sphi 0, %s137
      %s154 = sphi 0, %s138
    $region4: #{features_detector_pallas.1} parent=1 // loop_header_branch
      %17 = sbr.rel (%p15) target = $region8
    $region5: #{features_detector_pallas.1} parent=1 // loop_body
      %s19 = ssub.s32 %s14, 1
      %s20 = ssub.s32 %s14, 2
      %s21 = sadd.s32 %s14, 1
      %s22 = ssub.s32 %s14, %s21
      %p23 = scmp.eq.s32.totalorder %s22, 0
      %s25 = sadd.s32 %s24, 1
      %s26 = scalar_select %p23, %s24, %s25
      %p29 = pneg %p23
      %p30 = scmp.eq.s32.totalorder %s14, 1
      %p31 = por %p29, %p30
      %p32 = scmp.ne.s32.totalorder %s24, %s27
      %p33 = scmp.eq.s32.totalorder %s14, 0
      %p34 = por %p32, %p33
      %p35 = scmp.ne.s32.totalorder %s24, %s27
      %p36 = scmp.eq.s32.totalorder %s19, 1
      %p37 = por %p35, %p36
      %p38 = scmp.ne.s32.totalorder %s27, %s28
      %p39 = scmp.eq.s32.totalorder %s19, 0
      %p40 = por %p38, %p39
      %p41 = scmp.ne.s32.totalorder %s27, %s28
      %p42 = scmp.eq.s32.totalorder %s20, 1
      %p43 = por %p41, %p42
      %p45 = scmp.ne.s32.totalorder %s28, %s44
      %p46 = scmp.eq.s32.totalorder %s20, 0
      %p47 = por %p45, %p46
      %s49 = sadd.s32 %s48, 1
      %p52 = scmp.eq.s32.totalorder %s14, 1
      %p53 = scmp.ne.s32.totalorder %s48, %s50
      %p54 = scmp.eq.s32.totalorder %s14, 0
      %p55 = por %p53, %p54
      %p56 = scmp.ne.s32.totalorder %s48, %s50
      %p57 = scmp.eq.s32.totalorder %s19, 1
      %p58 = por %p56, %p57
      %p59 = scmp.ne.s32.totalorder %s50, %s51
      %p60 = scmp.eq.s32.totalorder %s19, 0
      %p61 = por %p59, %p60
      %p62 = scmp.ne.s32.totalorder %s50, %s51
      %p63 = scmp.eq.s32.totalorder %s20, 1
      %p64 = por %p62, %p63
      %p66 = scmp.ne.s32.totalorder %s51, %s65
      %p67 = scmp.eq.s32.totalorder %s20, 0
      %p68 = por %p66, %p67
      %s70 = sadd.s32 %s69, 1
      %p73 = scmp.eq.s32.totalorder %s14, 1
      %p74 = scmp.ne.s32.totalorder %s69, %s71
      %p75 = scmp.eq.s32.totalorder %s14, 0
      %p76 = por %p74, %p75
      %p77 = scmp.ne.s32.totalorder %s69, %s71
      %p78 = scmp.eq.s32.totalorder %s19, 1
      %p79 = por %p77, %p78
      %p80 = scmp.ne.s32.totalorder %s71, %s72
      %p81 = scmp.eq.s32.totalorder %s19, 0
      %p82 = por %p80, %p81
      %p83 = scmp.ne.s32.totalorder %s71, %s72
      %p84 = scmp.eq.s32.totalorder %s20, 1
      %p85 = por %p83, %p84
      %p87 = scmp.ne.s32.totalorder %s72, %s86
      %p88 = scmp.eq.s32.totalorder %s20, 0
      %p89 = por %p87, %p88
      %s91 = sadd.s32 %s90, 1
      %p94 = scmp.eq.s32.totalorder %s14, 1
      %p95 = scmp.ne.s32.totalorder %s90, %s92
      %p96 = scmp.eq.s32.totalorder %s14, 0
      %p97 = por %p95, %p96
      %p98 = scmp.ne.s32.totalorder %s90, %s92
      %p99 = scmp.eq.s32.totalorder %s19, 1
      %p100 = por %p98, %p99
      %p101 = scmp.ne.s32.totalorder %s92, %s93
      %p102 = scmp.eq.s32.totalorder %s19, 0
      %p103 = por %p101, %p102
      %p104 = scmp.ne.s32.totalorder %s92, %s93
      %p105 = scmp.eq.s32.totalorder %s20, 1
      %p106 = por %p104, %p105
      %p108 = scmp.ne.s32.totalorder %s93, %s107
      %p109 = scmp.eq.s32.totalorder %s20, 0
      %p110 = por %p108, %p109
      %s112 = sadd.s32 %s111, 1
      %p115 = scmp.eq.s32.totalorder %s14, 1
      %p116 = scmp.ne.s32.totalorder %s111, %s113
      %p117 = scmp.eq.s32.totalorder %s14, 0
      %p118 = por %p116, %p117
      %p119 = scmp.ne.s32.totalorder %s111, %s113
      %p120 = scmp.eq.s32.totalorder %s19, 1
      %p121 = por %p119, %p120
      %p122 = scmp.ne.s32.totalorder %s113, %s114
      %p123 = scmp.eq.s32.totalorder %s19, 0
      %p124 = por %p122, %p123
      %p125 = scmp.ne.s32.totalorder %s113, %s114
      %p126 = scmp.eq.s32.totalorder %s20, 1
      %p127 = por %p125, %p126
      %p129 = scmp.ne.s32.totalorder %s114, %s128
      %p130 = scmp.eq.s32.totalorder %s20, 0
      %p131 = por %p129, %p130
      %s132 = ssub.s32 %s14, %s21
      %p133 = scmp.eq.s32.totalorder %s132, 0
      %s135 = sadd.s32 %s134, 1
      %s136 = scalar_select %p133, %s134, %s135
      %p139 = pneg %p133
      %p140 = scmp.eq.s32.totalorder %s14, 1
      %p141 = por %p139, %p140
      %p142 = scmp.ne.s32.totalorder %s134, %s137
      %p143 = scmp.eq.s32.totalorder %s14, 0
      %p144 = por %p142, %p143
      %p145 = scmp.ne.s32.totalorder %s134, %s137
      %p146 = scmp.eq.s32.totalorder %s19, 1
      %p147 = por %p145, %p146
      %p148 = scmp.ne.s32.totalorder %s137, %s138
      %p149 = scmp.eq.s32.totalorder %s19, 0
      %p150 = por %p148, %p149
      %p151 = scmp.ne.s32.totalorder %s137, %s138
      %p152 = scmp.eq.s32.totalorder %s20, 1
      %p153 = por %p151, %p152
      %p155 = scmp.ne.s32.totalorder %s138, %s154
      %p156 = scmp.eq.s32.totalorder %s20, 0
      %p157 = por %p155, %p156
      %p158 = scmp.le.s32.totalorder 1, %s14
      %p159 = scmp.lt.s32.totalorder %s14, 3
      %p160 = pnand %p158, %p159
      %p161 = pneg %p160
      // Predicated region
      $region9: #{features_detector_pallas.1} parent=5 // pred_check
        _
      $region10: #{features_detector_pallas.1} parent=5 // pred_check_branch
        %163 = sbr.rel (%p160) target = $region12
      $region11: #{features_detector_pallas.1} parent=5 // pred_region
        %s164 = ssub.s32 %s14, 1
        // Predicated region
        $region13: #{features_detector_pallas.1} parent=11 // pred_check
          %p165 = pneg %p61
        $region14: #{features_detector_pallas.1} parent=11 // pred_check_branch
          %167 = sbr.rel (%p165) target = $region16
        $region15: #{features_detector_pallas.1} parent=11 // pred_region
          _
        $region16: #{features_detector_pallas.1} parent=11 // pred_fallthru
          _
        // Predicated region
        $region17: #{features_detector_pallas.1} parent=11 // pred_check
          %p168 = pneg %p82
        $region18: #{features_detector_pallas.1} parent=11 // pred_check_branch
          %170 = sbr.rel (%p168) target = $region20
        $region19: #{features_detector_pallas.1} parent=11 // pred_region
          _
        $region20: #{features_detector_pallas.1} parent=11 // pred_fallthru
          _
        // Predicated region
        $region21: #{features_detector_pallas.1} parent=11 // pred_check
          %p171 = pneg %p103
        $region22: #{features_detector_pallas.1} parent=11 // pred_check_branch
          %173 = sbr.rel (%p171) target = $region24
        $region23: #{features_detector_pallas.1} parent=11 // pred_region
          _
        $region24: #{features_detector_pallas.1} parent=11 // pred_fallthru
          _
        // Predicated region
        $region25: #{features_detector_pallas.1} parent=11 // pred_check
          %p174 = pneg %p124
        $region26: #{features_detector_pallas.1} parent=11 // pred_check_branch
          %176 = sbr.rel (%p174) target = $region28
        $region27: #{features_detector_pallas.1} parent=11 // pred_region
          _
        $region28: #{features_detector_pallas.1} parent=11 // pred_fallthru
          _
      $region12: #{features_detector_pallas.1} parent=5 // pred_fallthru
        _
      %p177 = scmp.lt.s32.totalorder %s14, 2
      // Predicated region
      $region29: #{features_detector_pallas.1} parent=5 // pred_check
        %p178 = pneg %p177
      $region30: #{features_detector_pallas.1} parent=5 // pred_check_branch
        %180 = sbr.rel (%p178) target = $region32
      $region31: #{features_detector_pallas.1} parent=5 // pred_region
        // Predicated region
        $region33: #{features_detector_pallas.1} parent=31 // pred_check
          %p181 = pneg %p34
        $region34: #{features_detector_pallas.1} parent=31 // pred_check_branch
          %183 = sbr.rel (%p181) target = $region36
        $region35: #{features_detector_pallas.1} parent=31 // pred_region
          %p184 = scmp.lt.s32.totalorder %s14, 1
          %s185 = scalar_select %p184, %s14, 1
          %s186 = smul.addr %s185, 32
          %s187 = smul.addr %s186, 8
          %s188 = scalar_lea.vmem %s0, %s187
        $region36: #{features_detector_pallas.1} parent=31 // pred_fallthru
          _
      $region32: #{features_detector_pallas.1} parent=5 // pred_fallthru
        _
      %p189 = scmp.le.s32.totalorder 1, %s14
      %p190 = scmp.lt.s32.totalorder %s14, 3
      %p191 = pnand %p189, %p190
      %p192 = pneg %p191
      // Predicated region
      $region37: #{features_detector_pallas.1} parent=5 // pred_check
        _
      $region38: #{features_detector_pallas.1} parent=5 // pred_check_branch
        %194 = sbr.rel (%p191) target = $region40
      $region39: #{features_detector_pallas.1} parent=5 // pred_region
        %s195 = ssub.s32 %s14, 1
        %p196 = scmp.lt.s32.totalorder %s19, 1
        %s197 = scalar_select %p196, %s19, 1
        %s198 = smul.addr %s197, 32
        %s199 = smul.addr %s198, 8
        %s200 = scalar_lea.vmem %s0, %s199
        %p201 = pneg %p40
        %p202 = pneg %p37
        %p203 = pneg %p61
        %p204 = pneg %p58
        %p205 = pneg %p82
        %p206 = pneg %p79
        %p207 = pneg %p103
        %p208 = pneg %p100
        %p209 = pneg %p124
        %p210 = pneg %p121
        %p211 = pneg %p150
        %p212 = pneg %p147
        %s213 = sand.u32 %s137, 1
        %s214 = scalar_lea.sflag [#allocation4], %s213
        %s215 = sand.u32 %s137, 1
        %s216 = smul.addr %s215, 16
        %s217 = scalar_lea.vmem [#allocation3], %s216
        %p218 = scmp.lt.s32.totalorder %s19, 1
        %s219 = scalar_select %p218, %s19, 1
        %s220 = smul.addr %s219, 32
        %s221 = smul.addr %s220, 8
        %s222 = scalar_lea.vmem %s0, %s221
        %v223 = vld [vmem:[%s222] sm:$0xff]
        %v224 = vld [vmem:[%s222 + $0x8] sm:$0xff]
        %v225 = vld [vmem:[%s222 + $0x10] sm:$0xff]
        %v226 = vld [vmem:[%s222 + $0x18] sm:$0xff]
        %v227 = vld [vmem:[%s222 + $0x20] sm:$0xff]
        %v228 = vld [vmem:[%s222 + $0x28] sm:$0xff]
        %v229 = vld [vmem:[%s222 + $0x30] sm:$0xff]
        %v230 = vld [vmem:[%s222 + $0x38] sm:$0xff]
        %v231 = vld [vmem:[%s222 + $0x40] sm:$0xff]
        %v232 = vld [vmem:[%s222 + $0x48] sm:$0xff]
        %v233 = vld [vmem:[%s222 + $0x50] sm:$0xff]
        %v234 = vld [vmem:[%s222 + $0x58] sm:$0xff]
        %v235 = vld [vmem:[%s222 + $0x60] sm:$0xff]
        %v236 = vld [vmem:[%s222 + $0x68] sm:$0xff]
        %v237 = vld [vmem:[%s222 + $0x70] sm:$0xff]
        %v238 = vld [vmem:[%s222 + $0x78] sm:$0xff]
        %v239 = vld [vmem:[%s222 + $0x80] sm:$0xff]
        %v240 = vld [vmem:[%s222 + $0x88] sm:$0xff]
        %v241 = vld [vmem:[%s222 + $0x90] sm:$0xff]
        %v242 = vld [vmem:[%s222 + $0x98] sm:$0xff]
        %v243 = vld [vmem:[%s222 + $0xa0] sm:$0xff]
        %v244 = vld [vmem:[%s222 + $0xa8] sm:$0xff]
        %v245 = vld [vmem:[%s222 + $0xb0] sm:$0xff]
        %v246 = vld [vmem:[%s222 + $0xb8] sm:$0xff]
        %v247 = vld [vmem:[%s222 + $0xc0] sm:$0xff]
        %v248 = vld [vmem:[%s222 + $0xc8] sm:$0xff]
        %v249 = vld [vmem:[%s222 + $0xd0] sm:$0xff]
        %v250 = vld [vmem:[%s222 + $0xd8] sm:$0xff]
        %v251 = vld [vmem:[%s222 + $0xe0] sm:$0xff]
        %v252 = vld [vmem:[%s222 + $0xe8] sm:$0xff]
        %v253 = vld [vmem:[%s222 + $0xf0] sm:$0xff]
        %v254 = vld [vmem:[%s222 + $0xf8] sm:$0xff]
        %v255 = vld [vmem:[%s1] sm:$0xff]
        %v256 = vld [vmem:[%s1 + $0x8] sm:$0xff]
        %v257 = vld [vmem:[%s1 + $0x10] sm:$0xff]
        %v258 = vld [vmem:[%s1 + $0x18] sm:$0xff]
        %v259 = vld [vmem:[%s1 + $0x20] sm:$0xff]
        %v260 = vld [vmem:[%s1 + $0x28] sm:$0xff]
        %v261 = vld [vmem:[%s1 + $0x30] sm:$0xff]
        %v262 = vld [vmem:[%s1 + $0x38] sm:$0xff]
        %v263 = vld [vmem:[%s1 + $0x40] sm:$0xff]
        %v264 = vld [vmem:[%s1 + $0x48] sm:$0xff]
        %v265 = vld [vmem:[%s1 + $0x50] sm:$0xff]
        %v266 = vld [vmem:[%s1 + $0x58] sm:$0xff]
        %v267 = vld [vmem:[%s1 + $0x60] sm:$0xff]
        %v268 = vld [vmem:[%s1 + $0x68] sm:$0xff]
        %v269 = vld [vmem:[%s1 + $0x70] sm:$0xff]
        %v270 = vld [vmem:[%s1 + $0x78] sm:$0xff]
        %v271 = vld [vmem:[%s2] sm:$0x1]
        %v273 = vlaneseq
        %v274 = vshrl.u32 %v273, 7
        %v275 = vsub.s32 0, %v274
        %v276 = vrot.slane %v271, %v275
        %278 = vmatprep.subr.mxu0 0.0
        %279 = vmatpush1.msra.mxu0 %v255
        %280 = vmatprep.subr.mxu0 0.0
        %281 = vmatpush1.msra.mxu0 %v256
        %282 = vmatprep.subr.mxu0 0.0
        %283 = vmatpush1.msra.mxu0 %v257
        %284 = vmatprep.subr.mxu0 0.0
        %285 = vmatpush1.msra.mxu0 %v258
        %286 = vmatprep.subr.mxu0 0.0
        %287 = vmatpush1.msra.mxu0 %v259
        %288 = vmatprep.subr.mxu0 0.0
        %289 = vmatpush1.msra.mxu0 %v260
        %290 = vmatprep.subr.mxu0 0.0
        %291 = vmatpush1.msra.mxu0 %v261
        %292 = vmatprep.subr.mxu0 0.0
        %293 = vmatpush1.msra.mxu0 %v262
        %294 = vmatprep.subr.mxu0 0.0
        %295 = vmatpush1.msra.mxu0 %v263
        %296 = vmatprep.subr.mxu0 0.0
        %297 = vmatpush1.msra.mxu0 %v264
        %298 = vmatprep.subr.mxu0 0.0
        %299 = vmatpush1.msra.mxu0 %v265
        %300 = vmatprep.subr.mxu0 0.0
        %301 = vmatpush1.msra.mxu0 %v266
        %302 = vmatprep.subr.mxu0 0.0
        %303 = vmatpush1.msra.mxu0 %v267
        %304 = vmatprep.subr.mxu0 0.0
        %305 = vmatpush1.msra.mxu0 %v268
        %306 = vmatprep.subr.mxu0 0.0
        %307 = vmatpush1.msra.mxu0 %v269
        %308 = vmatprep.subr.mxu0 0.0
        %309 = vmatpush1.msra.mxu0 %v270
        %310 = vmatprep.subr.mxu0 0.0
        %311 = vmatpush1.msra.mxu0 0.0
        %312 = vmatprep.subr.mxu0 0.0
        %313 = vmatpush1.msra.mxu0 0.0
        %314 = vmatprep.subr.mxu0 0.0
        %315 = vmatpush1.msra.mxu0 0.0
        %316 = vmatprep.subr.mxu0 0.0
        %317 = vmatpush1.msra.mxu0 0.0
        %318 = vmatprep.subr.mxu0 0.0
        %319 = vmatpush1.msra.mxu0 0.0
        %320 = vmatprep.subr.mxu0 0.0
        %321 = vmatpush1.msra.mxu0 0.0
        %322 = vmatprep.subr.mxu0 0.0
        %323 = vmatpush1.msra.mxu0 0.0
        %324 = vmatprep.subr.mxu0 0.0
        %325 = vmatpush1.msra.mxu0 0.0
        %326 = vmatprep.subr.mxu0 0.0
        %327 = vmatpush1.msra.mxu0 0.0
        %328 = vmatprep.subr.mxu0 0.0
        %329 = vmatpush1.msra.mxu0 0.0
        %330 = vmatprep.subr.mxu0 0.0
        %331 = vmatpush1.msra.mxu0 0.0
        %332 = vmatprep.subr.mxu0 0.0
        %333 = vmatpush1.msra.mxu0 0.0
        %334 = vmatprep.subr.mxu0 0.0
        %335 = vmatpush1.msra.mxu0 0.0
        %336 = vmatprep.subr.mxu0 0.0
        %337 = vmatpush1.msra.mxu0 0.0
        %338 = vmatprep.subr.mxu0 0.0
        %339 = vmatpush1.msra.mxu0 0.0
        %340 = vmatprep.subr.mxu0 0.0
        %341 = vmatpush1.msra.mxu0 0.0
        %342 = vmatprep.mubr.f32.mxu0 0.0
        %343 = vmatmul.mubr.f32.gmra.mrb[0].mxu0 %v223
        %v344 = vpop.f32.mrb[0].mxu0
        %v345 = vadd.f32 %v276, %v344
        %v346 = vpop.f32.mrb[0].mxu0
        %347 = vmatprep.mubr.f32.mxu0 0.0
        %348 = vmatmul.mubr.f32.gmra.mrb[0].mxu0 %v224
        %v349 = vpop.f32.mrb[0].mxu0
        %v350 = vadd.f32 %v276, %v349
        %v351 = vpop.f32.mrb[0].mxu0
        %352 = vmatprep.mubr.f32.mxu0 0.0
        %353 = vmatmul.mubr.f32.gmra.mrb[0].mxu0 %v225
        %v354 = vpop.f32.mrb[0].mxu0
        %v355 = vadd.f32 %v276, %v354
        %v356 = vpop.f32.mrb[0].mxu0
        %357 = vmatprep.mubr.f32.mxu0 0.0
        %358 = vmatmul.mubr.f32.gmra.mrb[0].mxu0 %v226
        %v359 = vpop.f32.mrb[0].mxu0
        %v360 = vadd.f32 %v276, %v359
        %v361 = vpop.f32.mrb[0].mxu0
        %362 = vmatprep.mubr.f32.mxu0 0.0
        %363 = vmatmul.mubr.f32.gmra.mrb[0].mxu0 %v227
        %v364 = vpop.f32.mrb[0].mxu0
        %v365 = vadd.f32 %v276, %v364
        %v366 = vpop.f32.mrb[0].mxu0
        %367 = vmatprep.mubr.f32.mxu0 0.0
        %368 = vmatmul.mubr.f32.gmra.mrb[0].mxu0 %v228
        %v369 = vpop.f32.mrb[0].mxu0
        %v370 = vadd.f32 %v276, %v369
        %v371 = vpop.f32.mrb[0].mxu0
        %372 = vmatprep.mubr.f32.mxu0 0.0
        %373 = vmatmul.mubr.f32.gmra.mrb[0].mxu0 %v229
        %v374 = vpop.f32.mrb[0].mxu0
        %v375 = vadd.f32 %v276, %v374
        %v376 = vpop.f32.mrb[0].mxu0
        %377 = vmatprep.mubr.f32.mxu0 0.0
        %378 = vmatmul.mubr.f32.gmra.mrb[0].mxu0 %v230
        %v379 = vpop.f32.mrb[0].mxu0
        %v380 = vadd.f32 %v276, %v379
        %v381 = vpop.f32.mrb[0].mxu0
        %382 = vmatprep.mubr.f32.mxu0 0.0
        %383 = vmatmul.mubr.f32.gmra.mrb[0].mxu0 %v231
        %v384 = vpop.f32.mrb[0].mxu0
        %v385 = vadd.f32 %v276, %v384
        %v386 = vpop.f32.mrb[0].mxu0
        %387 = vmatprep.mubr.f32.mxu0 0.0
        %388 = vmatmul.mubr.f32.gmra.mrb[0].mxu0 %v232
        %v389 = vpop.f32.mrb[0].mxu0
        %v390 = vadd.f32 %v276, %v389
        %v391 = vpop.f32.mrb[0].mxu0
        %392 = vmatprep.mubr.f32.mxu0 0.0
        %393 = vmatmul.mubr.f32.gmra.mrb[0].mxu0 %v233
        %v394 = vpop.f32.mrb[0].mxu0
        %v395 = vadd.f32 %v276, %v394
        %v396 = vpop.f32.mrb[0].mxu0
        %397 = vmatprep.mubr.f32.mxu0 0.0
        %398 = vmatmul.mubr.f32.gmra.mrb[0].mxu0 %v234
        %v399 = vpop.f32.mrb[0].mxu0
        %v400 = vadd.f32 %v276, %v399
        %v401 = vpop.f32.mrb[0].mxu0
        %402 = vmatprep.mubr.f32.mxu0 0.0
        %403 = vmatmul.mubr.f32.gmra.mrb[0].mxu0 %v235
        %v404 = vpop.f32.mrb[0].mxu0
        %v405 = vadd.f32 %v276, %v404
        %v406 = vpop.f32.mrb[0].mxu0
        %407 = vmatprep.mubr.f32.mxu0 0.0
        %408 = vmatmul.mubr.f32.gmra.mrb[0].mxu0 %v236
        %v409 = vpop.f32.mrb[0].mxu0
        %v410 = vadd.f32 %v276, %v409
        %v411 = vpop.f32.mrb[0].mxu0
        %412 = vmatprep.mubr.f32.mxu0 0.0
        %413 = vmatmul.mubr.f32.gmra.mrb[0].mxu0 %v237
        %v414 = vpop.f32.mrb[0].mxu0
        %v415 = vadd.f32 %v276, %v414
        %v416 = vpop.f32.mrb[0].mxu0
        %417 = vmatprep.mubr.f32.mxu0 0.0
        %418 = vmatmul.mubr.f32.gmra.mrb[0].mxu0 %v238
        %v419 = vpop.f32.mrb[0].mxu0
        %v420 = vadd.f32 %v276, %v419
        %v421 = vpop.f32.mrb[0].mxu0
        %422 = vmatprep.mubr.f32.mxu0 0.0
        %423 = vmatmul.mubr.f32.gmra.mrb[0].mxu0 %v239
        %v424 = vpop.f32.mrb[0].mxu0
        %v425 = vadd.f32 %v276, %v424
        %v426 = vpop.f32.mrb[0].mxu0
        %427 = vmatprep.mubr.f32.mxu0 0.0
        %428 = vmatmul.mubr.f32.gmra.mrb[0].mxu0 %v240
        %v429 = vpop.f32.mrb[0].mxu0
        %v430 = vadd.f32 %v276, %v429
        %v431 = vpop.f32.mrb[0].mxu0
        %432 = vmatprep.mubr.f32.mxu0 0.0
        %433 = vmatmul.mubr.f32.gmra.mrb[0].mxu0 %v241
        %v434 = vpop.f32.mrb[0].mxu0
        %v435 = vadd.f32 %v276, %v434
        %v436 = vpop.f32.mrb[0].mxu0
        %437 = vmatprep.mubr.f32.mxu0 0.0
        %438 = vmatmul.mubr.f32.gmra.mrb[0].mxu0 %v242
        %v439 = vpop.f32.mrb[0].mxu0
        %v440 = vadd.f32 %v276, %v439
        %v441 = vpop.f32.mrb[0].mxu0
        %442 = vmatprep.mubr.f32.mxu0 0.0
        %443 = vmatmul.mubr.f32.gmra.mrb[0].mxu0 %v243
        %v444 = vpop.f32.mrb[0].mxu0
        %v445 = vadd.f32 %v276, %v444
        %v446 = vpop.f32.mrb[0].mxu0
        %447 = vmatprep.mubr.f32.mxu0 0.0
        %448 = vmatmul.mubr.f32.gmra.mrb[0].mxu0 %v244
        %v449 = vpop.f32.mrb[0].mxu0
        %v450 = vadd.f32 %v276, %v449
        %v451 = vpop.f32.mrb[0].mxu0
        %452 = vmatprep.mubr.f32.mxu0 0.0
        %453 = vmatmul.mubr.f32.gmra.mrb[0].mxu0 %v245
        %v454 = vpop.f32.mrb[0].mxu0
        %v455 = vadd.f32 %v276, %v454
        %v456 = vpop.f32.mrb[0].mxu0
        %457 = vmatprep.mubr.f32.mxu0 0.0
        %458 = vmatmul.mubr.f32.gmra.mrb[0].mxu0 %v246
        %v459 = vpop.f32.mrb[0].mxu0
        %v460 = vadd.f32 %v276, %v459
        %v461 = vpop.f32.mrb[0].mxu0
        %462 = vmatprep.mubr.f32.mxu0 0.0
        %463 = vmatmul.mubr.f32.gmra.mrb[0].mxu0 %v247
        %v464 = vpop.f32.mrb[0].mxu0
        %v465 = vadd.f32 %v276, %v464
        %v466 = vpop.f32.mrb[0].mxu0
        %467 = vmatprep.mubr.f32.mxu0 0.0
        %468 = vmatmul.mubr.f32.gmra.mrb[0].mxu0 %v248
        %v469 = vpop.f32.mrb[0].mxu0
        %v470 = vadd.f32 %v276, %v469
        %v471 = vpop.f32.mrb[0].mxu0
        %472 = vmatprep.mubr.f32.mxu0 0.0
        %473 = vmatmul.mubr.f32.gmra.mrb[0].mxu0 %v249
        %v474 = vpop.f32.mrb[0].mxu0
        %v475 = vadd.f32 %v276, %v474
        %v476 = vpop.f32.mrb[0].mxu0
        %477 = vmatprep.mubr.f32.mxu0 0.0
        %478 = vmatmul.mubr.f32.gmra.mrb[0].mxu0 %v250
        %v479 = vpop.f32.mrb[0].mxu0
        %v480 = vadd.f32 %v276, %v479
        %v481 = vpop.f32.mrb[0].mxu0
        %482 = vmatprep.mubr.f32.mxu0 0.0
        %483 = vmatmul.mubr.f32.gmra.mrb[0].mxu0 %v251
        %v484 = vpop.f32.mrb[0].mxu0
        %v485 = vadd.f32 %v276, %v484
        %v486 = vpop.f32.mrb[0].mxu0
        %487 = vmatprep.mubr.f32.mxu0 0.0
        %488 = vmatmul.mubr.f32.gmra.mrb[0].mxu0 %v252
        %v489 = vpop.f32.mrb[0].mxu0
        %v490 = vadd.f32 %v276, %v489
        %v491 = vpop.f32.mrb[0].mxu0
        %492 = vmatprep.mubr.f32.mxu0 0.0
        %493 = vmatmul.mubr.f32.gmra.mrb[0].mxu0 %v253
        %v494 = vpop.f32.mrb[0].mxu0
        %v495 = vadd.f32 %v276, %v494
        %v496 = vpop.f32.mrb[0].mxu0
        %497 = vmatprep.mubr.f32.mxu0 0.0
        %498 = vmatmul.mubr.f32.gmra.mrb[0].mxu0 %v254
        %v499 = vpop.f32.mrb[0].mxu0
        %v500 = vadd.f32 %v276, %v499
        %v501 = vpop.f32.mrb[0].mxu0
        %502 = vdwg.mxu0
        %v503 = vmax.f32 %v345, %v355
        %v504 = vmax.f32 %v350, %v360
        %v505 = vmax.f32 %v365, %v375
        %v506 = vmax.f32 %v370, %v380
        %v507 = vmax.f32 %v385, %v395
        %v508 = vmax.f32 %v390, %v400
        %v509 = vmax.f32 %v405, %v415
        %v510 = vmax.f32 %v410, %v420
        %v511 = vmax.f32 %v425, %v435
        %v512 = vmax.f32 %v430, %v440
        %v513 = vmax.f32 %v445, %v455
        %v514 = vmax.f32 %v450, %v460
        %v515 = vmax.f32 %v465, %v475
        %v516 = vmax.f32 %v470, %v480
        %v517 = vmax.f32 %v485, %v495
        %v518 = vmax.f32 %v490, %v500
        %v535 = vcombine.high %v503, %v503
        %v537 = vunpack.c.l.s4 1983009808
        %v538 = vunpack.c.0.s8 %v537
        %v539 = vlaneseq
        %v540 = vshrl.u32 %v539, 7
        %v541 = vsub.s32 %v538, %v540
        %v542 = vrot.slane %v503, %v541
        %v544 = vunpack.c.l.s4 1983009808
        %v545 = vunpack.c.0.s8 %v544
        %v546 = vlaneseq
        %v547 = vshrl.u32 %v546, 7
        %v548 = vsub.s32 %v545, %v547
        %v549 = vrot.slane %v535, %v548
        %v550 = vcombine.high %v542, %v542
        %v551 = vcombine.high %v549, %v549
        %v552 = vcombine.high %v504, %v504
        %v554 = vunpack.c.l.s4 1983009808
        %v555 = vunpack.c.0.s8 %v554
        %v556 = vlaneseq
        %v557 = vshrl.u32 %v556, 7
        %v558 = vsub.s32 %v555, %v557
        %v559 = vrot.slane %v504, %v558
        %v561 = vunpack.c.l.s4 1983009808
        %v562 = vunpack.c.0.s8 %v561
        %v563 = vlaneseq
        %v564 = vshrl.u32 %v563, 7
        %v565 = vsub.s32 %v562, %v564
        %v566 = vrot.slane %v552, %v565
        %v567 = vcombine.high %v559, %v559
        %v568 = vcombine.high %v566, %v566
        %v569 = vcombine.high %v505, %v505
        %v571 = vunpack.c.l.s4 1983009808
        %v572 = vunpack.c.0.s8 %v571
        %v573 = vlaneseq
        %v574 = vshrl.u32 %v573, 7
        %v575 = vsub.s32 %v572, %v574
        %v576 = vrot.slane %v505, %v575
        %v578 = vunpack.c.l.s4 1983009808
        %v579 = vunpack.c.0.s8 %v578
        %v580 = vlaneseq
        %v581 = vshrl.u32 %v580, 7
        %v582 = vsub.s32 %v579, %v581
        %v583 = vrot.slane %v569, %v582
        %v584 = vcombine.high %v576, %v576
        %v585 = vcombine.high %v583, %v583
        %v586 = vcombine.high %v506, %v506
        %v588 = vunpack.c.l.s4 1983009808
        %v589 = vunpack.c.0.s8 %v588
        %v590 = vlaneseq
        %v591 = vshrl.u32 %v590, 7
        %v592 = vsub.s32 %v589, %v591
        %v593 = vrot.slane %v506, %v592
        %v595 = vunpack.c.l.s4 1983009808
        %v596 = vunpack.c.0.s8 %v595
        %v597 = vlaneseq
        %v598 = vshrl.u32 %v597, 7
        %v599 = vsub.s32 %v596, %v598
        %v600 = vrot.slane %v586, %v599
        %v601 = vcombine.high %v593, %v593
        %v602 = vcombine.high %v600, %v600
        %v603 = vcombine.high %v507, %v507
        %v605 = vunpack.c.l.s4 1983009808
        %v606 = vunpack.c.0.s8 %v605
        %v607 = vlaneseq
        %v608 = vshrl.u32 %v607, 7
        %v609 = vsub.s32 %v606, %v608
        %v610 = vrot.slane %v507, %v609
        %v612 = vunpack.c.l.s4 1983009808
        %v613 = vunpack.c.0.s8 %v612
        %v614 = vlaneseq
        %v615 = vshrl.u32 %v614, 7
        %v616 = vsub.s32 %v613, %v615
        %v617 = vrot.slane %v603, %v616
        %v618 = vcombine.high %v610, %v610
        %v619 = vcombine.high %v617, %v617
        %v620 = vcombine.high %v508, %v508
        %v622 = vunpack.c.l.s4 1983009808
        %v623 = vunpack.c.0.s8 %v622
        %v624 = vlaneseq
        %v625 = vshrl.u32 %v624, 7
        %v626 = vsub.s32 %v623, %v625
        %v627 = vrot.slane %v508, %v626
        %v629 = vunpack.c.l.s4 1983009808
        %v630 = vunpack.c.0.s8 %v629
        %v631 = vlaneseq
        %v632 = vshrl.u32 %v631, 7
        %v633 = vsub.s32 %v630, %v632
        %v634 = vrot.slane %v620, %v633
        %v635 = vcombine.high %v627, %v627
        %v636 = vcombine.high %v634, %v634
        %v637 = vcombine.high %v509, %v509
        %v639 = vunpack.c.l.s4 1983009808
        %v640 = vunpack.c.0.s8 %v639
        %v641 = vlaneseq
        %v642 = vshrl.u32 %v641, 7
        %v643 = vsub.s32 %v640, %v642
        %v644 = vrot.slane %v509, %v643
        %v646 = vunpack.c.l.s4 1983009808
        %v647 = vunpack.c.0.s8 %v646
        %v648 = vlaneseq
        %v649 = vshrl.u32 %v648, 7
        %v650 = vsub.s32 %v647, %v649
        %v651 = vrot.slane %v637, %v650
        %v652 = vcombine.high %v644, %v644
        %v653 = vcombine.high %v651, %v651
        %v654 = vcombine.high %v510, %v510
        %v656 = vunpack.c.l.s4 1983009808
        %v657 = vunpack.c.0.s8 %v656
        %v658 = vlaneseq
        %v659 = vshrl.u32 %v658, 7
        %v660 = vsub.s32 %v657, %v659
        %v661 = vrot.slane %v510, %v660
        %v663 = vunpack.c.l.s4 1983009808
        %v664 = vunpack.c.0.s8 %v663
        %v665 = vlaneseq
        %v666 = vshrl.u32 %v665, 7
        %v667 = vsub.s32 %v664, %v666
        %v668 = vrot.slane %v654, %v667
        %v669 = vcombine.high %v661, %v661
        %v670 = vcombine.high %v668, %v668
        %v671 = vcombine.high %v511, %v511
        %v673 = vunpack.c.l.s4 1983009808
        %v674 = vunpack.c.0.s8 %v673
        %v675 = vlaneseq
        %v676 = vshrl.u32 %v675, 7
        %v677 = vsub.s32 %v674, %v676
        %v678 = vrot.slane %v511, %v677
        %v680 = vunpack.c.l.s4 1983009808
        %v681 = vunpack.c.0.s8 %v680
        %v682 = vlaneseq
        %v683 = vshrl.u32 %v682, 7
        %v684 = vsub.s32 %v681, %v683
        %v685 = vrot.slane %v671, %v684
        %v686 = vcombine.high %v678, %v678
        %v687 = vcombine.high %v685, %v685
        %v688 = vcombine.high %v512, %v512
        %v690 = vunpack.c.l.s4 1983009808
        %v691 = vunpack.c.0.s8 %v690
        %v692 = vlaneseq
        %v693 = vshrl.u32 %v692, 7
        %v694 = vsub.s32 %v691, %v693
        %v695 = vrot.slane %v512, %v694
        %v697 = vunpack.c.l.s4 1983009808
        %v698 = vunpack.c.0.s8 %v697
        %v699 = vlaneseq
        %v700 = vshrl.u32 %v699, 7
        %v701 = vsub.s32 %v698, %v700
        %v702 = vrot.slane %v688, %v701
        %v703 = vcombine.high %v695, %v695
        %v704 = vcombine.high %v702, %v702
        %v705 = vcombine.high %v513, %v513
        %v707 = vunpack.c.l.s4 1983009808
        %v708 = vunpack.c.0.s8 %v707
        %v709 = vlaneseq
        %v710 = vshrl.u32 %v709, 7
        %v711 = vsub.s32 %v708, %v710
        %v712 = vrot.slane %v513, %v711
        %v714 = vunpack.c.l.s4 1983009808
        %v715 = vunpack.c.0.s8 %v714
        %v716 = vlaneseq
        %v717 = vshrl.u32 %v716, 7
        %v718 = vsub.s32 %v715, %v717
        %v719 = vrot.slane %v705, %v718
        %v720 = vcombine.high %v712, %v712
        %v721 = vcombine.high %v719, %v719
        %v722 = vcombine.high %v514, %v514
        %v724 = vunpack.c.l.s4 1983009808
        %v725 = vunpack.c.0.s8 %v724
        %v726 = vlaneseq
        %v727 = vshrl.u32 %v726, 7
        %v728 = vsub.s32 %v725, %v727
        %v729 = vrot.slane %v514, %v728
        %v731 = vunpack.c.l.s4 1983009808
        %v732 = vunpack.c.0.s8 %v731
        %v733 = vlaneseq
        %v734 = vshrl.u32 %v733, 7
        %v735 = vsub.s32 %v732, %v734
        %v736 = vrot.slane %v722, %v735
        %v737 = vcombine.high %v729, %v729
        %v738 = vcombine.high %v736, %v736
        %v739 = vcombine.high %v515, %v515
        %v741 = vunpack.c.l.s4 1983009808
        %v742 = vunpack.c.0.s8 %v741
        %v743 = vlaneseq
        %v744 = vshrl.u32 %v743, 7
        %v745 = vsub.s32 %v742, %v744
        %v746 = vrot.slane %v515, %v745
        %v748 = vunpack.c.l.s4 1983009808
        %v749 = vunpack.c.0.s8 %v748
        %v750 = vlaneseq
        %v751 = vshrl.u32 %v750, 7
        %v752 = vsub.s32 %v749, %v751
        %v753 = vrot.slane %v739, %v752
        %v754 = vcombine.high %v746, %v746
        %v755 = vcombine.high %v753, %v753
        %v756 = vcombine.high %v516, %v516
        %v758 = vunpack.c.l.s4 1983009808
        %v759 = vunpack.c.0.s8 %v758
        %v760 = vlaneseq
        %v761 = vshrl.u32 %v760, 7
        %v762 = vsub.s32 %v759, %v761
        %v763 = vrot.slane %v516, %v762
        %v765 = vunpack.c.l.s4 1983009808
        %v766 = vunpack.c.0.s8 %v765
        %v767 = vlaneseq
        %v768 = vshrl.u32 %v767, 7
        %v769 = vsub.s32 %v766, %v768
        %v770 = vrot.slane %v756, %v769
        %v771 = vcombine.high %v763, %v763
        %v772 = vcombine.high %v770, %v770
        %v773 = vcombine.high %v517, %v517
        %v775 = vunpack.c.l.s4 1983009808
        %v776 = vunpack.c.0.s8 %v775
        %v777 = vlaneseq
        %v778 = vshrl.u32 %v777, 7
        %v779 = vsub.s32 %v776, %v778
        %v780 = vrot.slane %v517, %v779
        %v782 = vunpack.c.l.s4 1983009808
        %v783 = vunpack.c.0.s8 %v782
        %v784 = vlaneseq
        %v785 = vshrl.u32 %v784, 7
        %v786 = vsub.s32 %v783, %v785
        %v787 = vrot.slane %v773, %v786
        %v788 = vcombine.high %v780, %v780
        %v789 = vcombine.high %v787, %v787
        %v790 = vcombine.high %v518, %v518
        %v792 = vunpack.c.l.s4 1983009808
        %v793 = vunpack.c.0.s8 %v792
        %v794 = vlaneseq
        %v795 = vshrl.u32 %v794, 7
        %v796 = vsub.s32 %v793, %v795
        %v797 = vrot.slane %v518, %v796
        %v799 = vunpack.c.l.s4 1983009808
        %v800 = vunpack.c.0.s8 %v799
        %v801 = vlaneseq
        %v802 = vshrl.u32 %v801, 7
        %v803 = vsub.s32 %v800, %v802
        %v804 = vrot.slane %v790, %v803
        %v805 = vcombine.high %v797, %v797
        %v806 = vcombine.high %v804, %v804
        %v871 = vrot.slane %v542, 7
        %v872 = vrot.slane %v871, 2
        %v873 = vrot.slane %v550, 7
        %v874 = vrot.slane %v873, 2
        %v875 = vrot.slane %v549, 7
        %v876 = vrot.slane %v875, 2
        %v877 = vrot.slane %v551, 7
        %v878 = vrot.slane %v877, 2
        %v879 = vrot.slane %v559, 7
        %v880 = vrot.slane %v879, 2
        %v881 = vrot.slane %v567, 7
        %v882 = vrot.slane %v881, 2
        %v883 = vrot.slane %v566, 7
        %v884 = vrot.slane %v883, 2
        %v885 = vrot.slane %v568, 7
        %v886 = vrot.slane %v885, 2
        %v887 = vrot.slane %v576, 7
        %v888 = vrot.slane %v887, 2
        %v889 = vrot.slane %v584, 7
        %v890 = vrot.slane %v889, 2
        %v891 = vrot.slane %v583, 7
        %v892 = vrot.slane %v891, 2
        %v893 = vrot.slane %v585, 7
        %v894 = vrot.slane %v893, 2
        %v895 = vrot.slane %v593, 7
        %v896 = vrot.slane %v895, 2
        %v897 = vrot.slane %v601, 7
        %v898 = vrot.slane %v897, 2
        %v899 = vrot.slane %v600, 7
        %v900 = vrot.slane %v899, 2
        %v901 = vrot.slane %v602, 7
        %v902 = vrot.slane %v901, 2
        %v903 = vrot.slane %v610, 7
        %v904 = vrot.slane %v903, 2
        %v905 = vrot.slane %v618, 7
        %v906 = vrot.slane %v905, 2
        %v907 = vrot.slane %v617, 7
        %v908 = vrot.slane %v907, 2
        %v909 = vrot.slane %v619, 7
        %v910 = vrot.slane %v909, 2
        %v911 = vrot.slane %v627, 7
        %v912 = vrot.slane %v911, 2
        %v913 = vrot.slane %v635, 7
        %v914 = vrot.slane %v913, 2
        %v915 = vrot.slane %v634, 7
        %v916 = vrot.slane %v915, 2
        %v917 = vrot.slane %v636, 7
        %v918 = vrot.slane %v917, 2
        %v919 = vrot.slane %v644, 7
        %v920 = vrot.slane %v919, 2
        %v921 = vrot.slane %v652, 7
        %v922 = vrot.slane %v921, 2
        %v923 = vrot.slane %v651, 7
        %v924 = vrot.slane %v923, 2
        %v925 = vrot.slane %v653, 7
        %v926 = vrot.slane %v925, 2
        %v927 = vrot.slane %v661, 7
        %v928 = vrot.slane %v927, 2
        %v929 = vrot.slane %v669, 7
        %v930 = vrot.slane %v929, 2
        %v931 = vrot.slane %v668, 7
        %v932 = vrot.slane %v931, 2
        %v933 = vrot.slane %v670, 7
        %v934 = vrot.slane %v933, 2
        %v935 = vrot.slane %v678, 7
        %v936 = vrot.slane %v935, 2
        %v937 = vrot.slane %v686, 7
        %v938 = vrot.slane %v937, 2
        %v939 = vrot.slane %v685, 7
        %v940 = vrot.slane %v939, 2
        %v941 = vrot.slane %v687, 7
        %v942 = vrot.slane %v941, 2
        %v943 = vrot.slane %v695, 7
        %v944 = vrot.slane %v943, 2
        %v945 = vrot.slane %v703, 7
        %v946 = vrot.slane %v945, 2
        %v947 = vrot.slane %v702, 7
        %v948 = vrot.slane %v947, 2
        %v949 = vrot.slane %v704, 7
        %v950 = vrot.slane %v949, 2
        %v951 = vrot.slane %v712, 7
        %v952 = vrot.slane %v951, 2
        %v953 = vrot.slane %v720, 7
        %v954 = vrot.slane %v953, 2
        %v955 = vrot.slane %v719, 7
        %v956 = vrot.slane %v955, 2
        %v957 = vrot.slane %v721, 7
        %v958 = vrot.slane %v957, 2
        %v959 = vrot.slane %v729, 7
        %v960 = vrot.slane %v959, 2
        %v961 = vrot.slane %v737, 7
        %v962 = vrot.slane %v961, 2
        %v963 = vrot.slane %v736, 7
        %v964 = vrot.slane %v963, 2
        %v965 = vrot.slane %v738, 7
        %v966 = vrot.slane %v965, 2
        %v967 = vrot.slane %v746, 7
        %v968 = vrot.slane %v967, 2
        %v969 = vrot.slane %v754, 7
        %v970 = vrot.slane %v969, 2
        %v971 = vrot.slane %v753, 7
        %v972 = vrot.slane %v971, 2
        %v973 = vrot.slane %v755, 7
        %v974 = vrot.slane %v973, 2
        %v975 = vrot.slane %v763, 7
        %v976 = vrot.slane %v975, 2
        %v977 = vrot.slane %v771, 7
        %v978 = vrot.slane %v977, 2
        %v979 = vrot.slane %v770, 7
        %v980 = vrot.slane %v979, 2
        %v981 = vrot.slane %v772, 7
        %v982 = vrot.slane %v981, 2
        %v983 = vrot.slane %v780, 7
        %v984 = vrot.slane %v983, 2
        %v985 = vrot.slane %v788, 7
        %v986 = vrot.slane %v985, 2
        %v987 = vrot.slane %v787, 7
        %v988 = vrot.slane %v987, 2
        %v989 = vrot.slane %v789, 7
        %v990 = vrot.slane %v989, 2
        %v991 = vrot.slane %v797, 7
        %v992 = vrot.slane %v991, 2
        %v993 = vrot.slane %v805, 7
        %v994 = vrot.slane %v993, 2
        %v995 = vrot.slane %v804, 7
        %v996 = vrot.slane %v995, 2
        %v997 = vrot.slane %v806, 7
        %v998 = vrot.slane %v997, 2
        %v1063 = vmax.f32 %v542, %v872
        %v1064 = vmax.f32 %v550, %v874
        %v1065 = vmax.f32 %v549, %v876
        %v1066 = vmax.f32 %v551, %v878
        %v1067 = vmax.f32 %v559, %v880
        %v1068 = vmax.f32 %v567, %v882
        %v1069 = vmax.f32 %v566, %v884
        %v1070 = vmax.f32 %v568, %v886
        %v1071 = vmax.f32 %v576, %v888
        %v1072 = vmax.f32 %v584, %v890
        %v1073 = vmax.f32 %v583, %v892
        %v1074 = vmax.f32 %v585, %v894
        %v1075 = vmax.f32 %v593, %v896
        %v1076 = vmax.f32 %v601, %v898
        %v1077 = vmax.f32 %v600, %v900
        %v1078 = vmax.f32 %v602, %v902
        %v1079 = vmax.f32 %v610, %v904
        %v1080 = vmax.f32 %v618, %v906
        %v1081 = vmax.f32 %v617, %v908
        %v1082 = vmax.f32 %v619, %v910
        %v1083 = vmax.f32 %v627, %v912
        %v1084 = vmax.f32 %v635, %v914
        %v1085 = vmax.f32 %v634, %v916
        %v1086 = vmax.f32 %v636, %v918
        %v1087 = vmax.f32 %v644, %v920
        %v1088 = vmax.f32 %v652, %v922
        %v1089 = vmax.f32 %v651, %v924
        %v1090 = vmax.f32 %v653, %v926
        %v1091 = vmax.f32 %v661, %v928
        %v1092 = vmax.f32 %v669, %v930
        %v1093 = vmax.f32 %v668, %v932
        %v1094 = vmax.f32 %v670, %v934
        %v1095 = vmax.f32 %v678, %v936
        %v1096 = vmax.f32 %v686, %v938
        %v1097 = vmax.f32 %v685, %v940
        %v1098 = vmax.f32 %v687, %v942
        %v1099 = vmax.f32 %v695, %v944
        %v1100 = vmax.f32 %v703, %v946
        %v1101 = vmax.f32 %v702, %v948
        %v1102 = vmax.f32 %v704, %v950
        %v1103 = vmax.f32 %v712, %v952
        %v1104 = vmax.f32 %v720, %v954
        %v1105 = vmax.f32 %v719, %v956
        %v1106 = vmax.f32 %v721, %v958
        %v1107 = vmax.f32 %v729, %v960
        %v1108 = vmax.f32 %v737, %v962
        %v1109 = vmax.f32 %v736, %v964
        %v1110 = vmax.f32 %v738, %v966
        %v1111 = vmax.f32 %v746, %v968
        %v1112 = vmax.f32 %v754, %v970
        %v1113 = vmax.f32 %v753, %v972
        %v1114 = vmax.f32 %v755, %v974
        %v1115 = vmax.f32 %v763, %v976
        %v1116 = vmax.f32 %v771, %v978
        %v1117 = vmax.f32 %v770, %v980
        %v1118 = vmax.f32 %v772, %v982
        %v1119 = vmax.f32 %v780, %v984
        %v1120 = vmax.f32 %v788, %v986
        %v1121 = vmax.f32 %v787, %v988
        %v1122 = vmax.f32 %v789, %v990
        %v1123 = vmax.f32 %v797, %v992
        %v1124 = vmax.f32 %v805, %v994
        %v1125 = vmax.f32 %v804, %v996
        %v1126 = vmax.f32 %v806, %v998
        %v1127 = vmax.f32 %v1063, 0.0
        %v1128 = vmax.f32 %v1064, 0.0
        %v1129 = vmax.f32 %v1065, 0.0
        %v1130 = vmax.f32 %v1066, 0.0
        %v1131 = vmax.f32 %v1067, 0.0
        %v1132 = vmax.f32 %v1068, 0.0
        %v1133 = vmax.f32 %v1069, 0.0
        %v1134 = vmax.f32 %v1070, 0.0
        %v1135 = vmax.f32 %v1071, 0.0
        %v1136 = vmax.f32 %v1072, 0.0
        %v1137 = vmax.f32 %v1073, 0.0
        %v1138 = vmax.f32 %v1074, 0.0
        %v1139 = vmax.f32 %v1075, 0.0
        %v1140 = vmax.f32 %v1076, 0.0
        %v1141 = vmax.f32 %v1077, 0.0
        %v1142 = vmax.f32 %v1078, 0.0
        %v1143 = vmax.f32 %v1079, 0.0
        %v1144 = vmax.f32 %v1080, 0.0
        %v1145 = vmax.f32 %v1081, 0.0
        %v1146 = vmax.f32 %v1082, 0.0
        %v1147 = vmax.f32 %v1083, 0.0
        %v1148 = vmax.f32 %v1084, 0.0
        %v1149 = vmax.f32 %v1085, 0.0
        %v1150 = vmax.f32 %v1086, 0.0
        %v1151 = vmax.f32 %v1087, 0.0
        %v1152 = vmax.f32 %v1088, 0.0
        %v1153 = vmax.f32 %v1089, 0.0
        %v1154 = vmax.f32 %v1090, 0.0
        %v1155 = vmax.f32 %v1091, 0.0
        %v1156 = vmax.f32 %v1092, 0.0
        %v1157 = vmax.f32 %v1093, 0.0
        %v1158 = vmax.f32 %v1094, 0.0
        %v1159 = vmax.f32 %v1095, 0.0
        %v1160 = vmax.f32 %v1096, 0.0
        %v1161 = vmax.f32 %v1097, 0.0
        %v1162 = vmax.f32 %v1098, 0.0
        %v1163 = vmax.f32 %v1099, 0.0
        %v1164 = vmax.f32 %v1100, 0.0
        %v1165 = vmax.f32 %v1101, 0.0
        %v1166 = vmax.f32 %v1102, 0.0
        %v1167 = vmax.f32 %v1103, 0.0
        %v1168 = vmax.f32 %v1104, 0.0
        %v1169 = vmax.f32 %v1105, 0.0
        %v1170 = vmax.f32 %v1106, 0.0
        %v1171 = vmax.f32 %v1107, 0.0
        %v1172 = vmax.f32 %v1108, 0.0
        %v1173 = vmax.f32 %v1109, 0.0
        %v1174 = vmax.f32 %v1110, 0.0
        %v1175 = vmax.f32 %v1111, 0.0
        %v1176 = vmax.f32 %v1112, 0.0
        %v1177 = vmax.f32 %v1113, 0.0
        %v1178 = vmax.f32 %v1114, 0.0
        %v1179 = vmax.f32 %v1115, 0.0
        %v1180 = vmax.f32 %v1116, 0.0
        %v1181 = vmax.f32 %v1117, 0.0
        %v1182 = vmax.f32 %v1118, 0.0
        %v1183 = vmax.f32 %v1119, 0.0
        %v1184 = vmax.f32 %v1120, 0.0
        %v1185 = vmax.f32 %v1121, 0.0
        %v1186 = vmax.f32 %v1122, 0.0
        %v1187 = vmax.f32 %v1123, 0.0
        %v1188 = vmax.f32 %v1124, 0.0
        %v1189 = vmax.f32 %v1125, 0.0
        %v1190 = vmax.f32 %v1126, 0.0
        %vm1191 = vcmask 261120
        %1192 = vst.msk [vmem:[#allocation2] sm:$0xff] %vm1191, 0.0
        %vm1193 = vcmask 254976
        %1194 = vst.msk [vmem:[#allocation2 + $0x8] sm:$0x3] %vm1193, 0.0
        %1195 = vst.msk [vmem:[#allocation2 + $0x10] sm:$0xff] %vm1191, 0.0
        %1196 = vst.msk [vmem:[#allocation2 + $0x18] sm:$0x3] %vm1193, 0.0
        %1197 = vst.msk [vmem:[#allocation2 + $0x20] sm:$0xff] %vm1191, 0.0
        %1198 = vst.msk [vmem:[#allocation2 + $0x28] sm:$0x3] %vm1193, 0.0
        %1199 = vst.msk [vmem:[#allocation2 + $0x30] sm:$0xff] %vm1191, 0.0
        %1200 = vst.msk [vmem:[#allocation2 + $0x38] sm:$0x3] %vm1193, 0.0
        %1201 = vst.msk [vmem:[#allocation2 + $0x40] sm:$0xff] %vm1191, 0.0
        %1202 = vst.msk [vmem:[#allocation2 + $0x48] sm:$0x3] %vm1193, 0.0
        %1203 = vst.msk [vmem:[#allocation2 + $0x50] sm:$0xff] %vm1191, 0.0
        %1204 = vst.msk [vmem:[#allocation2 + $0x58] sm:$0x3] %vm1193, 0.0
        %1205 = vst.msk [vmem:[#allocation2 + $0x60] sm:$0xff] %vm1191, 0.0
        %1206 = vst.msk [vmem:[#allocation2 + $0x68] sm:$0x3] %vm1193, 0.0
        %1207 = vst.msk [vmem:[#allocation2 + $0x70] sm:$0xff] %vm1191, 0.0
        %1208 = vst.msk [vmem:[#allocation2 + $0x78] sm:$0x3] %vm1193, 0.0
        %1209 = vst.msk [vmem:[#allocation2 + $0x80] sm:$0xff] %vm1191, 0.0
        %1210 = vst.msk [vmem:[#allocation2 + $0x88] sm:$0x3] %vm1193, 0.0
        %1211 = vst.msk [vmem:[#allocation2 + $0x90] sm:$0xff] %vm1191, 0.0
        %1212 = vst.msk [vmem:[#allocation2 + $0x98] sm:$0x3] %vm1193, 0.0
        %v1277 = vlaneseq
        %v1278 = vshrl.u32 %v1277, 7
        %v1279 = vsub.s32 0, %v1278
        %v1280 = vrot.slane %v1127, %v1279
        %v1281 = vlaneseq
        %v1282 = vshrl.u32 %v1281, 7
        %v1283 = vsub.s32 0, %v1282
        %v1284 = vrot.slane %v1128, %v1283
        %v1285 = vlaneseq
        %v1286 = vshrl.u32 %v1285, 7
        %v1287 = vsub.s32 0, %v1286
        %v1288 = vrot.slane %v1129, %v1287
        %v1289 = vlaneseq
        %v1290 = vshrl.u32 %v1289, 7
        %v1291 = vsub.s32 0, %v1290
        %v1292 = vrot.slane %v1130, %v1291
        %v1293 = vlaneseq
        %v1294 = vshrl.u32 %v1293, 7
        %v1295 = vsub.s32 0, %v1294
        %v1296 = vrot.slane %v1131, %v1295
        %v1297 = vlaneseq
        %v1298 = vshrl.u32 %v1297, 7
        %v1299 = vsub.s32 0, %v1298
        %v1300 = vrot.slane %v1132, %v1299
        %v1301 = vlaneseq
        %v1302 = vshrl.u32 %v1301, 7
        %v1303 = vsub.s32 0, %v1302
        %v1304 = vrot.slane %v1133, %v1303
        %v1305 = vlaneseq
        %v1306 = vshrl.u32 %v1305, 7
        %v1307 = vsub.s32 0, %v1306
        %v1308 = vrot.slane %v1134, %v1307
        %v1309 = vlaneseq
        %v1310 = vshrl.u32 %v1309, 7
        %v1311 = vsub.s32 0, %v1310
        %v1312 = vrot.slane %v1135, %v1311
        %v1313 = vlaneseq
        %v1314 = vshrl.u32 %v1313, 7
        %v1315 = vsub.s32 0, %v1314
        %v1316 = vrot.slane %v1136, %v1315
        %v1317 = vlaneseq
        %v1318 = vshrl.u32 %v1317, 7
        %v1319 = vsub.s32 0, %v1318
        %v1320 = vrot.slane %v1137, %v1319
        %v1321 = vlaneseq
        %v1322 = vshrl.u32 %v1321, 7
        %v1323 = vsub.s32 0, %v1322
        %v1324 = vrot.slane %v1138, %v1323
        %v1325 = vlaneseq
        %v1326 = vshrl.u32 %v1325, 7
        %v1327 = vsub.s32 0, %v1326
        %v1328 = vrot.slane %v1139, %v1327
        %v1329 = vlaneseq
        %v1330 = vshrl.u32 %v1329, 7
        %v1331 = vsub.s32 0, %v1330
        %v1332 = vrot.slane %v1140, %v1331
        %v1333 = vlaneseq
        %v1334 = vshrl.u32 %v1333, 7
        %v1335 = vsub.s32 0, %v1334
        %v1336 = vrot.slane %v1141, %v1335
        %v1337 = vlaneseq
        %v1338 = vshrl.u32 %v1337, 7
        %v1339 = vsub.s32 0, %v1338
        %v1340 = vrot.slane %v1142, %v1339
        %v1341 = vlaneseq
        %v1342 = vshrl.u32 %v1341, 7
        %v1343 = vsub.s32 0, %v1342
        %v1344 = vrot.slane %v1143, %v1343
        %v1345 = vlaneseq
        %v1346 = vshrl.u32 %v1345, 7
        %v1347 = vsub.s32 0, %v1346
        %v1348 = vrot.slane %v1144, %v1347
        %v1349 = vlaneseq
        %v1350 = vshrl.u32 %v1349, 7
        %v1351 = vsub.s32 0, %v1350
        %v1352 = vrot.slane %v1145, %v1351
        %v1353 = vlaneseq
        %v1354 = vshrl.u32 %v1353, 7
        %v1355 = vsub.s32 0, %v1354
        %v1356 = vrot.slane %v1146, %v1355
        %v1357 = vlaneseq
        %v1358 = vshrl.u32 %v1357, 7
        %v1359 = vsub.s32 0, %v1358
        %v1360 = vrot.slane %v1147, %v1359
        %v1361 = vlaneseq
        %v1362 = vshrl.u32 %v1361, 7
        %v1363 = vsub.s32 0, %v1362
        %v1364 = vrot.slane %v1148, %v1363
        %v1365 = vlaneseq
        %v1366 = vshrl.u32 %v1365, 7
        %v1367 = vsub.s32 0, %v1366
        %v1368 = vrot.slane %v1149, %v1367
        %v1369 = vlaneseq
        %v1370 = vshrl.u32 %v1369, 7
        %v1371 = vsub.s32 0, %v1370
        %v1372 = vrot.slane %v1150, %v1371
        %v1373 = vlaneseq
        %v1374 = vshrl.u32 %v1373, 7
        %v1375 = vsub.s32 0, %v1374
        %v1376 = vrot.slane %v1151, %v1375
        %v1377 = vlaneseq
        %v1378 = vshrl.u32 %v1377, 7
        %v1379 = vsub.s32 0, %v1378
        %v1380 = vrot.slane %v1152, %v1379
        %v1381 = vlaneseq
        %v1382 = vshrl.u32 %v1381, 7
        %v1383 = vsub.s32 0, %v1382
        %v1384 = vrot.slane %v1153, %v1383
        %v1385 = vlaneseq
        %v1386 = vshrl.u32 %v1385, 7
        %v1387 = vsub.s32 0, %v1386
        %v1388 = vrot.slane %v1154, %v1387
        %v1389 = vlaneseq
        %v1390 = vshrl.u32 %v1389, 7
        %v1391 = vsub.s32 0, %v1390
        %v1392 = vrot.slane %v1155, %v1391
        %v1393 = vlaneseq
        %v1394 = vshrl.u32 %v1393, 7
        %v1395 = vsub.s32 0, %v1394
        %v1396 = vrot.slane %v1156, %v1395
        %v1397 = vlaneseq
        %v1398 = vshrl.u32 %v1397, 7
        %v1399 = vsub.s32 0, %v1398
        %v1400 = vrot.slane %v1157, %v1399
        %v1401 = vlaneseq
        %v1402 = vshrl.u32 %v1401, 7
        %v1403 = vsub.s32 0, %v1402
        %v1404 = vrot.slane %v1158, %v1403
        %v1405 = vlaneseq
        %v1406 = vshrl.u32 %v1405, 7
        %v1407 = vsub.s32 0, %v1406
        %v1408 = vrot.slane %v1159, %v1407
        %v1409 = vlaneseq
        %v1410 = vshrl.u32 %v1409, 7
        %v1411 = vsub.s32 0, %v1410
        %v1412 = vrot.slane %v1160, %v1411
        %v1413 = vlaneseq
        %v1414 = vshrl.u32 %v1413, 7
        %v1415 = vsub.s32 0, %v1414
        %v1416 = vrot.slane %v1161, %v1415
        %v1417 = vlaneseq
        %v1418 = vshrl.u32 %v1417, 7
        %v1419 = vsub.s32 0, %v1418
        %v1420 = vrot.slane %v1162, %v1419
        %v1421 = vlaneseq
        %v1422 = vshrl.u32 %v1421, 7
        %v1423 = vsub.s32 0, %v1422
        %v1424 = vrot.slane %v1163, %v1423
        %v1425 = vlaneseq
        %v1426 = vshrl.u32 %v1425, 7
        %v1427 = vsub.s32 0, %v1426
        %v1428 = vrot.slane %v1164, %v1427
        %v1429 = vlaneseq
        %v1430 = vshrl.u32 %v1429, 7
        %v1431 = vsub.s32 0, %v1430
        %v1432 = vrot.slane %v1165, %v1431
        %v1433 = vlaneseq
        %v1434 = vshrl.u32 %v1433, 7
        %v1435 = vsub.s32 0, %v1434
        %v1436 = vrot.slane %v1166, %v1435
        %v1437 = vlaneseq
        %v1438 = vshrl.u32 %v1437, 7
        %v1439 = vsub.s32 0, %v1438
        %v1440 = vrot.slane %v1167, %v1439
        %v1441 = vlaneseq
        %v1442 = vshrl.u32 %v1441, 7
        %v1443 = vsub.s32 0, %v1442
        %v1444 = vrot.slane %v1168, %v1443
        %v1445 = vlaneseq
        %v1446 = vshrl.u32 %v1445, 7
        %v1447 = vsub.s32 0, %v1446
        %v1448 = vrot.slane %v1169, %v1447
        %v1449 = vlaneseq
        %v1450 = vshrl.u32 %v1449, 7
        %v1451 = vsub.s32 0, %v1450
        %v1452 = vrot.slane %v1170, %v1451
        %v1453 = vlaneseq
        %v1454 = vshrl.u32 %v1453, 7
        %v1455 = vsub.s32 0, %v1454
        %v1456 = vrot.slane %v1171, %v1455
        %v1457 = vlaneseq
        %v1458 = vshrl.u32 %v1457, 7
        %v1459 = vsub.s32 0, %v1458
        %v1460 = vrot.slane %v1172, %v1459
        %v1461 = vlaneseq
        %v1462 = vshrl.u32 %v1461, 7
        %v1463 = vsub.s32 0, %v1462
        %v1464 = vrot.slane %v1173, %v1463
        %v1465 = vlaneseq
        %v1466 = vshrl.u32 %v1465, 7
        %v1467 = vsub.s32 0, %v1466
        %v1468 = vrot.slane %v1174, %v1467
        %v1469 = vlaneseq
        %v1470 = vshrl.u32 %v1469, 7
        %v1471 = vsub.s32 0, %v1470
        %v1472 = vrot.slane %v1175, %v1471
        %v1473 = vlaneseq
        %v1474 = vshrl.u32 %v1473, 7
        %v1475 = vsub.s32 0, %v1474
        %v1476 = vrot.slane %v1176, %v1475
        %v1477 = vlaneseq
        %v1478 = vshrl.u32 %v1477, 7
        %v1479 = vsub.s32 0, %v1478
        %v1480 = vrot.slane %v1177, %v1479
        %v1481 = vlaneseq
        %v1482 = vshrl.u32 %v1481, 7
        %v1483 = vsub.s32 0, %v1482
        %v1484 = vrot.slane %v1178, %v1483
        %v1485 = vlaneseq
        %v1486 = vshrl.u32 %v1485, 7
        %v1487 = vsub.s32 0, %v1486
        %v1488 = vrot.slane %v1179, %v1487
        %v1489 = vlaneseq
        %v1490 = vshrl.u32 %v1489, 7
        %v1491 = vsub.s32 0, %v1490
        %v1492 = vrot.slane %v1180, %v1491
        %v1493 = vlaneseq
        %v1494 = vshrl.u32 %v1493, 7
        %v1495 = vsub.s32 0, %v1494
        %v1496 = vrot.slane %v1181, %v1495
        %v1497 = vlaneseq
        %v1498 = vshrl.u32 %v1497, 7
        %v1499 = vsub.s32 0, %v1498
        %v1500 = vrot.slane %v1182, %v1499
        %v1501 = vlaneseq
        %v1502 = vshrl.u32 %v1501, 7
        %v1503 = vsub.s32 0, %v1502
        %v1504 = vrot.slane %v1183, %v1503
        %v1505 = vlaneseq
        %v1506 = vshrl.u32 %v1505, 7
        %v1507 = vsub.s32 0, %v1506
        %v1508 = vrot.slane %v1184, %v1507
        %v1509 = vlaneseq
        %v1510 = vshrl.u32 %v1509, 7
        %v1511 = vsub.s32 0, %v1510
        %v1512 = vrot.slane %v1185, %v1511
        %v1513 = vlaneseq
        %v1514 = vshrl.u32 %v1513, 7
        %v1515 = vsub.s32 0, %v1514
        %v1516 = vrot.slane %v1186, %v1515
        %v1517 = vlaneseq
        %v1518 = vshrl.u32 %v1517, 7
        %v1519 = vsub.s32 0, %v1518
        %v1520 = vrot.slane %v1187, %v1519
        %v1521 = vlaneseq
        %v1522 = vshrl.u32 %v1521, 7
        %v1523 = vsub.s32 0, %v1522
        %v1524 = vrot.slane %v1188, %v1523
        %v1525 = vlaneseq
        %v1526 = vshrl.u32 %v1525, 7
        %v1527 = vsub.s32 0, %v1526
        %v1528 = vrot.slane %v1189, %v1527
        %v1529 = vlaneseq
        %v1530 = vshrl.u32 %v1529, 7
        %v1531 = vsub.s32 0, %v1530
        %v1532 = vrot.slane %v1190, %v1531
        %vm1533 = vcmask 1041409
        %v1534 = vsel %vm1533, %v1284, %v1280
        %vm1535 = vcmask 1042434
        %v1536 = vsel %vm1535, %v1288, %v1534
        %vm1537 = vcmask 1043459
        %v1538 = vsel %vm1537, %v1292, %v1536
        %vm1539 = vcmask 1044484
        %v1540 = vsel %vm1539, %v1296, %v1538
        %vm1541 = vcmask 1045509
        %v1542 = vsel %vm1541, %v1300, %v1540
        %vm1543 = vcmask 1046534
        %v1544 = vsel %vm1543, %v1304, %v1542
        %vm1545 = vcmask 1047559
        %v1546 = vsel %vm1545, %v1308, %v1544
        %v1547 = vsel %vm1533, %v1316, %v1312
        %v1548 = vsel %vm1535, %v1320, %v1547
        %v1549 = vsel %vm1537, %v1324, %v1548
        %v1550 = vsel %vm1539, %v1328, %v1549
        %v1551 = vsel %vm1541, %v1332, %v1550
        %v1552 = vsel %vm1543, %v1336, %v1551
        %v1553 = vsel %vm1545, %v1340, %v1552
        %v1554 = vsel %vm1533, %v1348, %v1344
        %v1555 = vsel %vm1535, %v1352, %v1554
        %v1556 = vsel %vm1537, %v1356, %v1555
        %v1557 = vsel %vm1539, %v1360, %v1556
        %v1558 = vsel %vm1541, %v1364, %v1557
        %v1559 = vsel %vm1543, %v1368, %v1558
        %v1560 = vsel %vm1545, %v1372, %v1559
        %v1561 = vsel %vm1533, %v1380, %v1376
        %v1562 = vsel %vm1535, %v1384, %v1561
        %v1563 = vsel %vm1537, %v1388, %v1562
        %v1564 = vsel %vm1539, %v1392, %v1563
        %v1565 = vsel %vm1541, %v1396, %v1564
        %v1566 = vsel %vm1543, %v1400, %v1565
        %v1567 = vsel %vm1545, %v1404, %v1566
        %v1568 = vsel %vm1533, %v1412, %v1408
        %v1569 = vsel %vm1535, %v1416, %v1568
        %v1570 = vsel %vm1537, %v1420, %v1569
        %v1571 = vsel %vm1539, %v1424, %v1570
        %v1572 = vsel %vm1541, %v1428, %v1571
        %v1573 = vsel %vm1543, %v1432, %v1572
        %v1574 = vsel %vm1545, %v1436, %v1573
        %v1575 = vsel %vm1533, %v1444, %v1440
        %v1576 = vsel %vm1535, %v1448, %v1575
        %v1577 = vsel %vm1537, %v1452, %v1576
        %v1578 = vsel %vm1539, %v1456, %v1577
        %v1579 = vsel %vm1541, %v1460, %v1578
        %v1580 = vsel %vm1543, %v1464, %v1579
        %v1581 = vsel %vm1545, %v1468, %v1580
        %v1582 = vsel %vm1533, %v1476, %v1472
        %v1583 = vsel %vm1535, %v1480, %v1582
        %v1584 = vsel %vm1537, %v1484, %v1583
        %v1585 = vsel %vm1539, %v1488, %v1584
        %v1586 = vsel %vm1541, %v1492, %v1585
        %v1587 = vsel %vm1543, %v1496, %v1586
        %v1588 = vsel %vm1545, %v1500, %v1587
        %v1589 = vsel %vm1533, %v1508, %v1504
        %v1590 = vsel %vm1535, %v1512, %v1589
        %v1591 = vsel %vm1537, %v1516, %v1590
        %v1592 = vsel %vm1539, %v1520, %v1591
        %v1593 = vsel %vm1541, %v1524, %v1592
        %v1594 = vsel %vm1543, %v1528, %v1593
        %v1595 = vsel %vm1545, %v1532, %v1594
        %s1604 = scalar_lea.vmem [#allocation2], 16
        %1605 = vst.msk [vmem:[%s1604 + $0x1] sm:$0xff] %vm1191, %v1546
        %1606 = vst.msk [vmem:[%s1604 + $0x11] sm:$0xff] %vm1191, %v1553
        %1607 = vst.msk [vmem:[%s1604 + $0x21] sm:$0xff] %vm1191, %v1560
        %1608 = vst.msk [vmem:[%s1604 + $0x31] sm:$0xff] %vm1191, %v1567
        %1609 = vst.msk [vmem:[%s1604 + $0x41] sm:$0xff] %vm1191, %v1574
        %1610 = vst.msk [vmem:[%s1604 + $0x51] sm:$0xff] %vm1191, %v1581
        %1611 = vst.msk [vmem:[%s1604 + $0x61] sm:$0xff] %vm1191, %v1588
        %1612 = vst.msk [vmem:[%s1604 + $0x71] sm:$0xff] %vm1191, %v1595
        %v1613 = vld [vmem:[#allocation2] sm:$0xff]
        %v1614 = vld [vmem:[#allocation2 + $0x10] sm:$0xff]
        %v1615 = vld [vmem:[#allocation2 + $0x20] sm:$0xff]
        %v1616 = vld [vmem:[#allocation2 + $0x30] sm:$0xff]
        %v1617 = vld [vmem:[#allocation2 + $0x40] sm:$0xff]
        %v1618 = vld [vmem:[#allocation2 + $0x50] sm:$0xff]
        %v1619 = vld [vmem:[#allocation2 + $0x60] sm:$0xff]
        %v1620 = vld [vmem:[#allocation2 + $0x70] sm:$0xff]
        %v1621 = vld [vmem:[#allocation2 + $0x1] sm:$0xff]
        %v1622 = vld [vmem:[#allocation2 + $0x11] sm:$0xff]
        %v1623 = vld [vmem:[#allocation2 + $0x21] sm:$0xff]
        %v1624 = vld [vmem:[#allocation2 + $0x31] sm:$0xff]
        %v1625 = vld [vmem:[#allocation2 + $0x41] sm:$0xff]
        %v1626 = vld [vmem:[#allocation2 + $0x51] sm:$0xff]
        %v1627 = vld [vmem:[#allocation2 + $0x61] sm:$0xff]
        %v1628 = vld [vmem:[#allocation2 + $0x71] sm:$0xff]
        %v1629 = vld [vmem:[#allocation2 + $0x2] sm:$0xff]
        %v1630 = vld [vmem:[#allocation2 + $0x12] sm:$0xff]
        %v1631 = vld [vmem:[#allocation2 + $0x22] sm:$0xff]
        %v1632 = vld [vmem:[#allocation2 + $0x32] sm:$0xff]
        %v1633 = vld [vmem:[#allocation2 + $0x42] sm:$0xff]
        %v1634 = vld [vmem:[#allocation2 + $0x52] sm:$0xff]
        %v1635 = vld [vmem:[#allocation2 + $0x62] sm:$0xff]
        %v1636 = vld [vmem:[#allocation2 + $0x72] sm:$0xff]
        %v1637 = vld [vmem:[%s1604] sm:$0xff]
        %v1638 = vld [vmem:[%s1604 + $0x10] sm:$0xff]
        %v1639 = vld [vmem:[%s1604 + $0x20] sm:$0xff]
        %v1640 = vld [vmem:[%s1604 + $0x30] sm:$0xff]
        %v1641 = vld [vmem:[%s1604 + $0x40] sm:$0xff]
        %v1642 = vld [vmem:[%s1604 + $0x50] sm:$0xff]
        %v1643 = vld [vmem:[%s1604 + $0x60] sm:$0xff]
        %v1644 = vld [vmem:[%s1604 + $0x70] sm:$0xff]
        %v1645 = vld [vmem:[%s1604 + $0x1] sm:$0xff]
        %v1646 = vld [vmem:[%s1604 + $0x11] sm:$0xff]
        %v1647 = vld [vmem:[%s1604 + $0x21] sm:$0xff]
        %v1648 = vld [vmem:[%s1604 + $0x31] sm:$0xff]
        %v1649 = vld [vmem:[%s1604 + $0x41] sm:$0xff]
        %v1650 = vld [vmem:[%s1604 + $0x51] sm:$0xff]
        %v1651 = vld [vmem:[%s1604 + $0x61] sm:$0xff]
        %v1652 = vld [vmem:[%s1604 + $0x71] sm:$0xff]
        %v1653 = vld [vmem:[%s1604 + $0x2] sm:$0xff]
        %v1654 = vld [vmem:[%s1604 + $0x12] sm:$0xff]
        %v1655 = vld [vmem:[%s1604 + $0x22] sm:$0xff]
        %v1656 = vld [vmem:[%s1604 + $0x32] sm:$0xff]
        %v1657 = vld [vmem:[%s1604 + $0x42] sm:$0xff]
        %v1658 = vld [vmem:[%s1604 + $0x52] sm:$0xff]
        %v1659 = vld [vmem:[%s1604 + $0x62] sm:$0xff]
        %v1660 = vld [vmem:[%s1604 + $0x72] sm:$0xff]
        %s1661 = scalar_lea.vmem [#allocation2], 32
        %v1662 = vld [vmem:[%s1661] sm:$0xff]
        %v1663 = vld [vmem:[%s1661 + $0x10] sm:$0xff]
        %v1664 = vld [vmem:[%s1661 + $0x20] sm:$0xff]
        %v1665 = vld [vmem:[%s1661 + $0x30] sm:$0xff]
        %v1666 = vld [vmem:[%s1661 + $0x40] sm:$0xff]
        %v1667 = vld [vmem:[%s1661 + $0x50] sm:$0xff]
        %v1668 = vld [vmem:[%s1661 + $0x60] sm:$0xff]
        %v1669 = vld [vmem:[%s1661 + $0x70] sm:$0xff]
        %v1670 = vld [vmem:[%s1661 + $0x1] sm:$0xff]
        %v1671 = vld [vmem:[%s1661 + $0x11] sm:$0xff]
        %v1672 = vld [vmem:[%s1661 + $0x21] sm:$0xff]
        %v1673 = vld [vmem:[%s1661 + $0x31] sm:$0xff]
        %v1674 = vld [vmem:[%s1661 + $0x41] sm:$0xff]
        %v1675 = vld [vmem:[%s1661 + $0x51] sm:$0xff]
        %v1676 = vld [vmem:[%s1661 + $0x61] sm:$0xff]
        %v1677 = vld [vmem:[%s1661 + $0x71] sm:$0xff]
        %v1678 = vld [vmem:[%s1661 + $0x2] sm:$0xff]
        %v1679 = vld [vmem:[%s1661 + $0x12] sm:$0xff]
        %v1680 = vld [vmem:[%s1661 + $0x22] sm:$0xff]
        %v1681 = vld [vmem:[%s1661 + $0x32] sm:$0xff]
        %v1682 = vld [vmem:[%s1661 + $0x42] sm:$0xff]
        %v1683 = vld [vmem:[%s1661 + $0x52] sm:$0xff]
        %v1684 = vld [vmem:[%s1661 + $0x62] sm:$0xff]
        %v1685 = vld [vmem:[%s1661 + $0x72] sm:$0xff]
        %1694 = vrot.lane.b32.xlu0 %v1621, 32
        %v1695 = vpop.permute.xlu0 %1694
        %1696 = vrot.lane.b32.xlu0 %v1622, 32
        %v1697 = vpop.permute.xlu0 %1696
        %1698 = vrot.lane.b32.xlu0 %v1623, 32
        %v1699 = vpop.permute.xlu0 %1698
        %1700 = vrot.lane.b32.xlu0 %v1624, 32
        %v1701 = vpop.permute.xlu0 %1700
        %1702 = vrot.lane.b32.xlu0 %v1625, 32
        %v1703 = vpop.permute.xlu0 %1702
        %1704 = vrot.lane.b32.xlu0 %v1626, 32
        %v1705 = vpop.permute.xlu0 %1704
        %1706 = vrot.lane.b32.xlu0 %v1627, 32
        %v1707 = vpop.permute.xlu0 %1706
        %1708 = vrot.lane.b32.xlu0 %v1628, 32
        %v1709 = vpop.permute.xlu0 %1708
        %1726 = vrot.lane.b32.xlu0 %v1629, 64
        %v1727 = vpop.permute.xlu0 %1726
        %1728 = vrot.lane.b32.xlu0 %v1630, 64
        %v1729 = vpop.permute.xlu0 %1728
        %1730 = vrot.lane.b32.xlu0 %v1631, 64
        %v1731 = vpop.permute.xlu0 %1730
        %1732 = vrot.lane.b32.xlu0 %v1632, 64
        %v1733 = vpop.permute.xlu0 %1732
        %1734 = vrot.lane.b32.xlu0 %v1633, 64
        %v1735 = vpop.permute.xlu0 %1734
        %1736 = vrot.lane.b32.xlu0 %v1634, 64
        %v1737 = vpop.permute.xlu0 %1736
        %1738 = vrot.lane.b32.xlu0 %v1635, 64
        %v1739 = vpop.permute.xlu0 %1738
        %1740 = vrot.lane.b32.xlu0 %v1636, 64
        %v1741 = vpop.permute.xlu0 %1740
        %1758 = vrot.lane.b32.xlu0 %v1637, 96
        %v1759 = vpop.permute.xlu0 %1758
        %1760 = vrot.lane.b32.xlu0 %v1638, 96
        %v1761 = vpop.permute.xlu0 %1760
        %1762 = vrot.lane.b32.xlu0 %v1639, 96
        %v1763 = vpop.permute.xlu0 %1762
        %1764 = vrot.lane.b32.xlu0 %v1640, 96
        %v1765 = vpop.permute.xlu0 %1764
        %1766 = vrot.lane.b32.xlu0 %v1641, 96
        %v1767 = vpop.permute.xlu0 %1766
        %1768 = vrot.lane.b32.xlu0 %v1642, 96
        %v1769 = vpop.permute.xlu0 %1768
        %1770 = vrot.lane.b32.xlu0 %v1643, 96
        %v1771 = vpop.permute.xlu0 %1770
        %1772 = vrot.lane.b32.xlu0 %v1644, 96
        %v1773 = vpop.permute.xlu0 %1772
        %1790 = vrot.lane.b32.xlu0 %v1653, 32
        %v1791 = vpop.permute.xlu0 %1790
        %1792 = vrot.lane.b32.xlu0 %v1654, 32
        %v1793 = vpop.permute.xlu0 %1792
        %1794 = vrot.lane.b32.xlu0 %v1655, 32
        %v1795 = vpop.permute.xlu0 %1794
        %1796 = vrot.lane.b32.xlu0 %v1656, 32
        %v1797 = vpop.permute.xlu0 %1796
        %1798 = vrot.lane.b32.xlu0 %v1657, 32
        %v1799 = vpop.permute.xlu0 %1798
        %1800 = vrot.lane.b32.xlu0 %v1658, 32
        %v1801 = vpop.permute.xlu0 %1800
        %1802 = vrot.lane.b32.xlu0 %v1659, 32
        %v1803 = vpop.permute.xlu0 %1802
        %1804 = vrot.lane.b32.xlu0 %v1660, 32
        %v1805 = vpop.permute.xlu0 %1804
        %1822 = vrot.lane.b32.xlu0 %v1662, 64
        %v1823 = vpop.permute.xlu0 %1822
        %1824 = vrot.lane.b32.xlu0 %v1663, 64
        %v1825 = vpop.permute.xlu0 %1824
        %1826 = vrot.lane.b32.xlu0 %v1664, 64
        %v1827 = vpop.permute.xlu0 %1826
        %1828 = vrot.lane.b32.xlu0 %v1665, 64
        %v1829 = vpop.permute.xlu0 %1828
        %1830 = vrot.lane.b32.xlu0 %v1666, 64
        %v1831 = vpop.permute.xlu0 %1830
        %1832 = vrot.lane.b32.xlu0 %v1667, 64
        %v1833 = vpop.permute.xlu0 %1832
        %1834 = vrot.lane.b32.xlu0 %v1668, 64
        %v1835 = vpop.permute.xlu0 %1834
        %1836 = vrot.lane.b32.xlu0 %v1669, 64
        %v1837 = vpop.permute.xlu0 %1836
        %1854 = vrot.lane.b32.xlu0 %v1670, 96
        %v1855 = vpop.permute.xlu0 %1854
        %1856 = vrot.lane.b32.xlu0 %v1671, 96
        %v1857 = vpop.permute.xlu0 %1856
        %1858 = vrot.lane.b32.xlu0 %v1672, 96
        %v1859 = vpop.permute.xlu0 %1858
        %1860 = vrot.lane.b32.xlu0 %v1673, 96
        %v1861 = vpop.permute.xlu0 %1860
        %1862 = vrot.lane.b32.xlu0 %v1674, 96
        %v1863 = vpop.permute.xlu0 %1862
        %1864 = vrot.lane.b32.xlu0 %v1675, 96
        %v1865 = vpop.permute.xlu0 %1864
        %1866 = vrot.lane.b32.xlu0 %v1676, 96
        %v1867 = vpop.permute.xlu0 %1866
        %1868 = vrot.lane.b32.xlu0 %v1677, 96
        %v1869 = vpop.permute.xlu0 %1868
        %v1878 = vsel %vm1191, %v1613, %v1695
        %v1879 = vsel %vm1191, %v1614, %v1697
        %v1880 = vsel %vm1191, %v1615, %v1699
        %v1881 = vsel %vm1191, %v1616, %v1701
        %v1882 = vsel %vm1191, %v1617, %v1703
        %v1883 = vsel %vm1191, %v1618, %v1705
        %v1884 = vsel %vm1191, %v1619, %v1707
        %v1885 = vsel %vm1191, %v1620, %v1709
        %vm1886 = vcmask 523264
        %v1887 = vsel %vm1886, %v1878, %v1727
        %v1888 = vsel %vm1886, %v1879, %v1729
        %v1889 = vsel %vm1886, %v1880, %v1731
        %v1890 = vsel %vm1886, %v1881, %v1733
        %v1891 = vsel %vm1886, %v1882, %v1735
        %v1892 = vsel %vm1886, %v1883, %v1737
        %v1893 = vsel %vm1886, %v1884, %v1739
        %v1894 = vsel %vm1886, %v1885, %v1741
        %vm1895 = vcmask 785408
        %v1896 = vsel %vm1895, %v1887, %v1759
        %v1897 = vsel %vm1895, %v1888, %v1761
        %v1898 = vsel %vm1895, %v1889, %v1763
        %v1899 = vsel %vm1895, %v1890, %v1765
        %v1900 = vsel %vm1895, %v1891, %v1767
        %v1901 = vsel %vm1895, %v1892, %v1769
        %v1902 = vsel %vm1895, %v1893, %v1771
        %v1903 = vsel %vm1895, %v1894, %v1773
        %v1904 = vsel %vm1191, %v1645, %v1791
        %v1905 = vsel %vm1191, %v1646, %v1793
        %v1906 = vsel %vm1191, %v1647, %v1795
        %v1907 = vsel %vm1191, %v1648, %v1797
        %v1908 = vsel %vm1191, %v1649, %v1799
        %v1909 = vsel %vm1191, %v1650, %v1801
        %v1910 = vsel %vm1191, %v1651, %v1803
        %v1911 = vsel %vm1191, %v1652, %v1805
        %v1912 = vsel %vm1886, %v1904, %v1823
        %v1913 = vsel %vm1886, %v1905, %v1825
        %v1914 = vsel %vm1886, %v1906, %v1827
        %v1915 = vsel %vm1886, %v1907, %v1829
        %v1916 = vsel %vm1886, %v1908, %v1831
        %v1917 = vsel %vm1886, %v1909, %v1833
        %v1918 = vsel %vm1886, %v1910, %v1835
        %v1919 = vsel %vm1886, %v1911, %v1837
        %v1920 = vsel %vm1895, %v1912, %v1855
        %v1921 = vsel %vm1895, %v1913, %v1857
        %v1922 = vsel %vm1895, %v1914, %v1859
        %v1923 = vsel %vm1895, %v1915, %v1861
        %v1924 = vsel %vm1895, %v1916, %v1863
        %v1925 = vsel %vm1895, %v1917, %v1865
        %v1926 = vsel %vm1895, %v1918, %v1867
        %v1927 = vsel %vm1895, %v1919, %v1869
        %v1928 = vld [vmem:[%s3] sm:$0xff]
        %v1929 = vld [vmem:[%s3 + $0x8] sm:$0xff]
        %v1930 = vld [vmem:[%s3 + $0x10] sm:$0xff]
        %v1931 = vld [vmem:[%s3 + $0x18] sm:$0xff]
        %v1932 = vld [vmem:[%s3 + $0x20] sm:$0xff]
        %v1933 = vld [vmem:[%s3 + $0x28] sm:$0xff]
        %v1934 = vld [vmem:[%s3 + $0x30] sm:$0xff]
        %v1935 = vld [vmem:[%s3 + $0x38] sm:$0xff]
        %v1936 = vld [vmem:[%s3 + $0x40] sm:$0xff]
        %v1937 = vld [vmem:[%s3 + $0x48] sm:$0xff]
        %v1938 = vld [vmem:[%s3 + $0x50] sm:$0xff]
        %v1939 = vld [vmem:[%s3 + $0x58] sm:$0xff]
        %v1940 = vld [vmem:[%s3 + $0x60] sm:$0xff]
        %v1941 = vld [vmem:[%s3 + $0x68] sm:$0xff]
        %v1942 = vld [vmem:[%s3 + $0x70] sm:$0xff]
        %v1943 = vld [vmem:[%s3 + $0x78] sm:$0xff]
        %v1944 = vld [vmem:[%s3 + $0x80] sm:$0xff]
        %v1945 = vld [vmem:[%s3 + $0x88] sm:$0xff]
        %v1946 = vld [vmem:[%s3 + $0x90] sm:$0xff]
        %v1947 = vld [vmem:[%s3 + $0x98] sm:$0xff]
        %v1948 = vld [vmem:[%s3 + $0xa0] sm:$0xff]
        %v1949 = vld [vmem:[%s3 + $0xa8] sm:$0xff]
        %v1950 = vld [vmem:[%s3 + $0xb0] sm:$0xff]
        %v1951 = vld [vmem:[%s3 + $0xb8] sm:$0xff]
        %v1952 = vld [vmem:[%s3 + $0xc0] sm:$0xff]
        %v1953 = vld [vmem:[%s3 + $0xc8] sm:$0xff]
        %v1954 = vld [vmem:[%s3 + $0xd0] sm:$0xff]
        %v1955 = vld [vmem:[%s3 + $0xd8] sm:$0xff]
        %v1956 = vld [vmem:[%s3 + $0xe0] sm:$0xff]
        %v1957 = vld [vmem:[%s3 + $0xe8] sm:$0xff]
        %v1958 = vld [vmem:[%s3 + $0xf0] sm:$0xff]
        %v1959 = vld [vmem:[%s3 + $0xf8] sm:$0xff]
        %v1960 = vld [vmem:[%s3 + $0x100] sm:$0xff]
        %v1961 = vld [vmem:[%s3 + $0x108] sm:$0xff]
        %v1962 = vld [vmem:[%s3 + $0x110] sm:$0xff]
        %v1963 = vld [vmem:[%s3 + $0x118] sm:$0xff]
        %v1964 = vld [vmem:[%s4] sm:$0x1]
        %v1966 = vlaneseq
        %v1967 = vshrl.u32 %v1966, 7
        %v1968 = vsub.s32 0, %v1967
        %v1969 = vrot.slane %v1964, %v1968
        %v1972 = vsel %vm1191, %v1678, 0
        %v1975 = vsel %vm1191, %v1679, 0
        %v1978 = vsel %vm1191, %v1680, 0
        %v1981 = vsel %vm1191, %v1681, 0
        %v1984 = vsel %vm1191, %v1682, 0
        %v1987 = vsel %vm1191, %v1683, 0
        %v1990 = vsel %vm1191, %v1684, 0
        %v1993 = vsel %vm1191, %v1685, 0
        %1995 = vmatprep.subr.mxu0 0.0
        %1996 = vmatpush1.msra.mxu0 %v1928
        %1997 = vmatprep.subr.mxu0 0.0
        %1998 = vmatpush1.msra.mxu0 %v1929
        %1999 = vmatprep.subr.mxu0 0.0
        %2000 = vmatpush1.msra.mxu0 %v1930
        %2001 = vmatprep.subr.mxu0 0.0
        %2002 = vmatpush1.msra.mxu0 %v1931
        %2003 = vmatprep.subr.mxu0 0.0
        %2004 = vmatpush1.msra.mxu0 %v1932
        %2005 = vmatprep.subr.mxu0 0.0
        %2006 = vmatpush1.msra.mxu0 %v1933
        %2007 = vmatprep.subr.mxu0 0.0
        %2008 = vmatpush1.msra.mxu0 %v1934
        %2009 = vmatprep.subr.mxu0 0.0
        %2010 = vmatpush1.msra.mxu0 %v1935
        %2011 = vmatprep.subr.mxu0 0.0
        %2012 = vmatpush1.msra.mxu0 %v1936
        %2013 = vmatprep.subr.mxu0 0.0
        %2014 = vmatpush1.msra.mxu0 %v1937
        %2015 = vmatprep.subr.mxu0 0.0
        %2016 = vmatpush1.msra.mxu0 %v1938
        %2017 = vmatprep.subr.mxu0 0.0
        %2018 = vmatpush1.msra.mxu0 %v1939
        %2019 = vmatprep.subr.mxu0 0.0
        %2020 = vmatpush1.msra.mxu0 %v1940
        %2021 = vmatprep.subr.mxu0 0.0
        %2022 = vmatpush1.msra.mxu0 %v1941
        %2023 = vmatprep.subr.mxu0 0.0
        %2024 = vmatpush1.msra.mxu0 %v1942
        %2025 = vmatprep.subr.mxu0 0.0
        %2026 = vmatpush1.msra.mxu0 %v1943
        %2027 = vmatprep.subr.mxu0 0.0
        %2028 = vmatpush1.msra.mxu0 %v1944
        %2029 = vmatprep.subr.mxu0 0.0
        %2030 = vmatpush1.msra.mxu0 %v1945
        %2031 = vmatprep.subr.mxu0 0.0
        %2032 = vmatpush1.msra.mxu0 %v1946
        %2033 = vmatprep.subr.mxu0 0.0
        %2034 = vmatpush1.msra.mxu0 %v1947
        %2035 = vmatprep.subr.mxu0 0.0
        %2036 = vmatpush1.msra.mxu0 %v1948
        %2037 = vmatprep.subr.mxu0 0.0
        %2038 = vmatpush1.msra.mxu0 %v1949
        %2039 = vmatprep.subr.mxu0 0.0
        %2040 = vmatpush1.msra.mxu0 %v1950
        %2041 = vmatprep.subr.mxu0 0.0
        %2042 = vmatpush1.msra.mxu0 %v1951
        %2043 = vmatprep.subr.mxu0 0.0
        %2044 = vmatpush1.msra.mxu0 %v1952
        %2045 = vmatprep.subr.mxu0 0.0
        %2046 = vmatpush1.msra.mxu0 %v1953
        %2047 = vmatprep.subr.mxu0 0.0
        %2048 = vmatpush1.msra.mxu0 %v1954
        %2049 = vmatprep.subr.mxu0 0.0
        %2050 = vmatpush1.msra.mxu0 %v1955
        %2051 = vmatprep.subr.mxu0 0.0
        %2052 = vmatpush1.msra.mxu0 %v1956
        %2053 = vmatprep.subr.mxu0 0.0
        %2054 = vmatpush1.msra.mxu0 %v1957
        %2055 = vmatprep.subr.mxu0 0.0
        %2056 = vmatpush1.msra.mxu0 %v1958
        %2057 = vmatprep.subr.mxu0 0.0
        %2058 = vmatpush1.msra.mxu0 %v1959
        %2059 = vmatprep.mubr.f32.mxu0 %v1920
        %2060 = vmatmul.mubr.f32.gmra.mrb[0].mxu0 %v1896
        %v2061 = vpop.f32.mrb[0].mxu0
        %v2062 = vadd.f32 %v1969, %v2061
        %v2063 = vpop.f32.mrb[0].mxu0
        %2064 = vmatprep.mubr.f32.mxu0 %v1921
        %2065 = vmatmul.mubr.f32.gmra.mrb[0].mxu0 %v1897
        %v2066 = vpop.f32.mrb[0].mxu0
        %v2067 = vadd.f32 %v1969, %v2066
        %v2068 = vpop.f32.mrb[0].mxu0
        %2069 = vmatprep.mubr.f32.mxu0 %v1922
        %2070 = vmatmul.mubr.f32.gmra.mrb[0].mxu0 %v1898
        %v2071 = vpop.f32.mrb[0].mxu0
        %v2072 = vadd.f32 %v1969, %v2071
        %v2073 = vpop.f32.mrb[0].mxu0
        %2074 = vmatprep.mubr.f32.mxu0 %v1923
        %2075 = vmatmul.mubr.f32.gmra.mrb[0].mxu0 %v1899
        %v2076 = vpop.f32.mrb[0].mxu0
        %v2077 = vadd.f32 %v1969, %v2076
        %v2078 = vpop.f32.mrb[0].mxu0
        %2079 = vmatprep.mubr.f32.mxu0 %v1924
        %2080 = vmatmul.mubr.f32.gmra.mrb[0].mxu0 %v1900
        %v2081 = vpop.f32.mrb[0].mxu0
        %v2082 = vadd.f32 %v1969, %v2081
        %v2083 = vpop.f32.mrb[0].mxu0
        %2084 = vmatprep.mubr.f32.mxu0 %v1925
        %2085 = vmatmul.mubr.f32.gmra.mrb[0].mxu0 %v1901
        %v2086 = vpop.f32.mrb[0].mxu0
        %v2087 = vadd.f32 %v1969, %v2086
        %v2088 = vpop.f32.mrb[0].mxu0
        %2089 = vmatprep.mubr.f32.mxu0 %v1926
        %2090 = vmatmul.mubr.f32.gmra.mrb[0].mxu0 %v1902
        %v2091 = vpop.f32.mrb[0].mxu0
        %v2092 = vadd.f32 %v1969, %v2091
        %v2093 = vpop.f32.mrb[0].mxu0
        %2094 = vmatprep.mubr.f32.mxu0 %v1927
        %2095 = vmatmul.mubr.f32.gmra.mrb[0].mxu0 %v1903
        %v2096 = vpop.f32.mrb[0].mxu0
        %v2097 = vadd.f32 %v1969, %v2096
        %v2098 = vpop.f32.mrb[0].mxu0
        %2099 = vdwg.mxu0
        %2100 = vmatprep.subr.mxu0 0.0
        %2101 = vmatpush1.msra.mxu0 %v1960
        %2102 = vmatprep.subr.mxu0 0.0
        %2103 = vmatpush1.msra.mxu0 %v1961
        %2104 = vmatprep.subr.mxu0 0.0
        %2105 = vmatpush1.msra.mxu0 %v1962
        %2106 = vmatprep.subr.mxu0 0.0
        %2107 = vmatpush1.msra.mxu0 %v1963
        %2108 = vmatprep.subr.mxu0 0.0
        %2109 = vmatpush1.msra.mxu0 0.0
        %2110 = vmatprep.subr.mxu0 0.0
        %2111 = vmatpush1.msra.mxu0 0.0
        %2112 = vmatprep.subr.mxu0 0.0
        %2113 = vmatpush1.msra.mxu0 0.0
        %2114 = vmatprep.subr.mxu0 0.0
        %2115 = vmatpush1.msra.mxu0 0.0
        %2116 = vmatprep.subr.mxu0 0.0
        %2117 = vmatpush1.msra.mxu0 0.0
        %2118 = vmatprep.subr.mxu0 0.0
        %2119 = vmatpush1.msra.mxu0 0.0
        %2120 = vmatprep.subr.mxu0 0.0
        %2121 = vmatpush1.msra.mxu0 0.0
        %2122 = vmatprep.subr.mxu0 0.0
        %2123 = vmatpush1.msra.mxu0 0.0
        %2124 = vmatprep.subr.mxu0 0.0
        %2125 = vmatpush1.msra.mxu0 0.0
        %2126 = vmatprep.subr.mxu0 0.0
        %2127 = vmatpush1.msra.mxu0 0.0
        %2128 = vmatprep.subr.mxu0 0.0
        %2129 = vmatpush1.msra.mxu0 0.0
        %2130 = vmatprep.subr.mxu0 0.0
        %2131 = vmatpush1.msra.mxu0 0.0
        %2132 = vmatprep.subr.mxu0 0.0
        %2133 = vmatpush1.msra.mxu0 0.0
        %2134 = vmatprep.subr.mxu0 0.0
        %2135 = vmatpush1.msra.mxu0 0.0
        %2136 = vmatprep.subr.mxu0 0.0
        %2137 = vmatpush1.msra.mxu0 0.0
        %2138 = vmatprep.subr.mxu0 0.0
        %2139 = vmatpush1.msra.mxu0 0.0
        %2140 = vmatprep.subr.mxu0 0.0
        %2141 = vmatpush1.msra.mxu0 0.0
        %2142 = vmatprep.subr.mxu0 0.0
        %2143 = vmatpush1.msra.mxu0 0.0
        %2144 = vmatprep.subr.mxu0 0.0
        %2145 = vmatpush1.msra.mxu0 0.0
        %2146 = vmatprep.subr.mxu0 0.0
        %2147 = vmatpush1.msra.mxu0 0.0
        %2148 = vmatprep.subr.mxu0 0.0
        %2149 = vmatpush1.msra.mxu0 0.0
        %2150 = vmatprep.subr.mxu0 0.0
        %2151 = vmatpush1.msra.mxu0 0.0
        %2152 = vmatprep.subr.mxu0 0.0
        %2153 = vmatpush1.msra.mxu0 0.0
        %2154 = vmatprep.subr.mxu0 0.0
        %2155 = vmatpush1.msra.mxu0 0.0
        %2156 = vmatprep.subr.mxu0 0.0
        %2157 = vmatpush1.msra.mxu0 0.0
        %2158 = vmatprep.subr.mxu0 0.0
        %2159 = vmatpush1.msra.mxu0 0.0
        %2160 = vmatprep.subr.mxu0 0.0
        %2161 = vmatpush1.msra.mxu0 0.0
        %2162 = vmatprep.subr.mxu0 0.0
        %2163 = vmatpush1.msra.mxu0 0.0
        %2164 = vmatprep.mubr.f32.mxu0 0.0
        %2165 = vmatmul.mubr.f32.gmra.mrb[0].mxu0 %v1972
        %v2166 = vpop.f32.mrb[0].mxu0
        %v2167 = vadd.f32 %v2062, %v2166
        %v2168 = vpop.f32.mrb[0].mxu0
        %2169 = vmatprep.mubr.f32.mxu0 0.0
        %2170 = vmatmul.mubr.f32.gmra.mrb[0].mxu0 %v1975
        %v2171 = vpop.f32.mrb[0].mxu0
        %v2172 = vadd.f32 %v2067, %v2171
        %v2173 = vpop.f32.mrb[0].mxu0
        %2174 = vmatprep.mubr.f32.mxu0 0.0
        %2175 = vmatmul.mubr.f32.gmra.mrb[0].mxu0 %v1978
        %v2176 = vpop.f32.mrb[0].mxu0
        %v2177 = vadd.f32 %v2072, %v2176
        %v2178 = vpop.f32.mrb[0].mxu0
        %2179 = vmatprep.mubr.f32.mxu0 0.0
        %2180 = vmatmul.mubr.f32.gmra.mrb[0].mxu0 %v1981
        %v2181 = vpop.f32.mrb[0].mxu0
        %v2182 = vadd.f32 %v2077, %v2181
        %v2183 = vpop.f32.mrb[0].mxu0
        %2184 = vmatprep.mubr.f32.mxu0 0.0
        %2185 = vmatmul.mubr.f32.gmra.mrb[0].mxu0 %v1984
        %v2186 = vpop.f32.mrb[0].mxu0
        %v2187 = vadd.f32 %v2082, %v2186
        %v2188 = vpop.f32.mrb[0].mxu0
        %2189 = vmatprep.mubr.f32.mxu0 0.0
        %2190 = vmatmul.mubr.f32.gmra.mrb[0].mxu0 %v1987
        %v2191 = vpop.f32.mrb[0].mxu0
        %v2192 = vadd.f32 %v2087, %v2191
        %v2193 = vpop.f32.mrb[0].mxu0
        %2194 = vmatprep.mubr.f32.mxu0 0.0
        %2195 = vmatmul.mubr.f32.gmra.mrb[0].mxu0 %v1990
        %v2196 = vpop.f32.mrb[0].mxu0
        %v2197 = vadd.f32 %v2092, %v2196
        %v2198 = vpop.f32.mrb[0].mxu0
        %2199 = vmatprep.mubr.f32.mxu0 0.0
        %2200 = vmatmul.mubr.f32.gmra.mrb[0].mxu0 %v1993
        %v2201 = vpop.f32.mrb[0].mxu0
        %v2202 = vadd.f32 %v2097, %v2201
        %v2203 = vpop.f32.mrb[0].mxu0
        %2204 = vdwg.mxu0
        %v2205 = vmax.f32 %v2167, %v2172
        %v2206 = vmax.f32 %v2177, %v2182
        %v2207 = vmax.f32 %v2187, %v2192
        %v2208 = vmax.f32 %v2197, %v2202
        %v2213 = vcombine.high %v2205, %v2205
        %v2215 = vunpack.c.l.s4 1983009808
        %v2216 = vunpack.c.0.s8 %v2215
        %v2217 = vlaneseq
        %v2218 = vshrl.u32 %v2217, 7
        %v2219 = vsub.s32 %v2216, %v2218
        %v2220 = vrot.slane %v2205, %v2219
        %v2222 = vunpack.c.l.s4 1983009808
        %v2223 = vunpack.c.0.s8 %v2222
        %v2224 = vlaneseq
        %v2225 = vshrl.u32 %v2224, 7
        %v2226 = vsub.s32 %v2223, %v2225
        %v2227 = vrot.slane %v2213, %v2226
        %v2228 = vcombine.high %v2220, %v2220
        %v2229 = vcombine.high %v2227, %v2227
        %v2230 = vcombine.high %v2206, %v2206
        %v2232 = vunpack.c.l.s4 1983009808
        %v2233 = vunpack.c.0.s8 %v2232
        %v2234 = vlaneseq
        %v2235 = vshrl.u32 %v2234, 7
        %v2236 = vsub.s32 %v2233, %v2235
        %v2237 = vrot.slane %v2206, %v2236
        %v2239 = vunpack.c.l.s4 1983009808
        %v2240 = vunpack.c.0.s8 %v2239
        %v2241 = vlaneseq
        %v2242 = vshrl.u32 %v2241, 7
        %v2243 = vsub.s32 %v2240, %v2242
        %v2244 = vrot.slane %v2230, %v2243
        %v2245 = vcombine.high %v2237, %v2237
        %v2246 = vcombine.high %v2244, %v2244
        %v2247 = vcombine.high %v2207, %v2207
        %v2249 = vunpack.c.l.s4 1983009808
        %v2250 = vunpack.c.0.s8 %v2249
        %v2251 = vlaneseq
        %v2252 = vshrl.u32 %v2251, 7
        %v2253 = vsub.s32 %v2250, %v2252
        %v2254 = vrot.slane %v2207, %v2253
        %v2256 = vunpack.c.l.s4 1983009808
        %v2257 = vunpack.c.0.s8 %v2256
        %v2258 = vlaneseq
        %v2259 = vshrl.u32 %v2258, 7
        %v2260 = vsub.s32 %v2257, %v2259
        %v2261 = vrot.slane %v2247, %v2260
        %v2262 = vcombine.high %v2254, %v2254
        %v2263 = vcombine.high %v2261, %v2261
        %v2264 = vcombine.high %v2208, %v2208
        %v2266 = vunpack.c.l.s4 1983009808
        %v2267 = vunpack.c.0.s8 %v2266
        %v2268 = vlaneseq
        %v2269 = vshrl.u32 %v2268, 7
        %v2270 = vsub.s32 %v2267, %v2269
        %v2271 = vrot.slane %v2208, %v2270
        %v2273 = vunpack.c.l.s4 1983009808
        %v2274 = vunpack.c.0.s8 %v2273
        %v2275 = vlaneseq
        %v2276 = vshrl.u32 %v2275, 7
        %v2277 = vsub.s32 %v2274, %v2276
        %v2278 = vrot.slane %v2264, %v2277
        %v2279 = vcombine.high %v2271, %v2271
        %v2280 = vcombine.high %v2278, %v2278
        %v2297 = vrot.slane %v2220, 7
        %v2298 = vrot.slane %v2297, 2
        %v2299 = vrot.slane %v2228, 7
        %v2300 = vrot.slane %v2299, 2
        %v2301 = vrot.slane %v2227, 7
        %v2302 = vrot.slane %v2301, 2
        %v2303 = vrot.slane %v2229, 7
        %v2304 = vrot.slane %v2303, 2
        %v2305 = vrot.slane %v2237, 7
        %v2306 = vrot.slane %v2305, 2
        %v2307 = vrot.slane %v2245, 7
        %v2308 = vrot.slane %v2307, 2
        %v2309 = vrot.slane %v2244, 7
        %v2310 = vrot.slane %v2309, 2
        %v2311 = vrot.slane %v2246, 7
        %v2312 = vrot.slane %v2311, 2
        %v2313 = vrot.slane %v2254, 7
        %v2314 = vrot.slane %v2313, 2
        %v2315 = vrot.slane %v2262, 7
        %v2316 = vrot.slane %v2315, 2
        %v2317 = vrot.slane %v2261, 7
        %v2318 = vrot.slane %v2317, 2
        %v2319 = vrot.slane %v2263, 7
        %v2320 = vrot.slane %v2319, 2
        %v2321 = vrot.slane %v2271, 7
        %v2322 = vrot.slane %v2321, 2
        %v2323 = vrot.slane %v2279, 7
        %v2324 = vrot.slane %v2323, 2
        %v2325 = vrot.slane %v2278, 7
        %v2326 = vrot.slane %v2325, 2
        %v2327 = vrot.slane %v2280, 7
        %v2328 = vrot.slane %v2327, 2
        %v2345 = vmax.f32 %v2220, %v2298
        %v2346 = vmax.f32 %v2228, %v2300
        %v2347 = vmax.f32 %v2227, %v2302
        %v2348 = vmax.f32 %v2229, %v2304
        %v2349 = vmax.f32 %v2237, %v2306
        %v2350 = vmax.f32 %v2245, %v2308
        %v2351 = vmax.f32 %v2244, %v2310
        %v2352 = vmax.f32 %v2246, %v2312
        %v2353 = vmax.f32 %v2254, %v2314
        %v2354 = vmax.f32 %v2262, %v2316
        %v2355 = vmax.f32 %v2261, %v2318
        %v2356 = vmax.f32 %v2263, %v2320
        %v2357 = vmax.f32 %v2271, %v2322
        %v2358 = vmax.f32 %v2279, %v2324
        %v2359 = vmax.f32 %v2278, %v2326
        %v2360 = vmax.f32 %v2280, %v2328
        %v2361 = vmax.f32 %v2345, 0.0
        %v2362 = vmax.f32 %v2346, 0.0
        %v2363 = vmax.f32 %v2347, 0.0
        %v2364 = vmax.f32 %v2348, 0.0
        %v2365 = vmax.f32 %v2349, 0.0
        %v2366 = vmax.f32 %v2350, 0.0
        %v2367 = vmax.f32 %v2351, 0.0
        %v2368 = vmax.f32 %v2352, 0.0
        %v2369 = vmax.f32 %v2353, 0.0
        %v2370 = vmax.f32 %v2354, 0.0
        %v2371 = vmax.f32 %v2355, 0.0
        %v2372 = vmax.f32 %v2356, 0.0
        %v2373 = vmax.f32 %v2357, 0.0
        %v2374 = vmax.f32 %v2358, 0.0
        %v2375 = vmax.f32 %v2359, 0.0
        %v2376 = vmax.f32 %v2360, 0.0
        %v2393 = vlaneseq
        %v2394 = vshrl.u32 %v2393, 7
        %v2395 = vsub.s32 0, %v2394
        %v2396 = vrot.slane %v2361, %v2395
        %v2397 = vlaneseq
        %v2398 = vshrl.u32 %v2397, 7
        %v2399 = vsub.s32 0, %v2398
        %v2400 = vrot.slane %v2362, %v2399
        %v2401 = vlaneseq
        %v2402 = vshrl.u32 %v2401, 7
        %v2403 = vsub.s32 0, %v2402
        %v2404 = vrot.slane %v2363, %v2403
        %v2405 = vlaneseq
        %v2406 = vshrl.u32 %v2405, 7
        %v2407 = vsub.s32 0, %v2406
        %v2408 = vrot.slane %v2364, %v2407
        %v2409 = vlaneseq
        %v2410 = vshrl.u32 %v2409, 7
        %v2411 = vsub.s32 0, %v2410
        %v2412 = vrot.slane %v2365, %v2411
        %v2413 = vlaneseq
        %v2414 = vshrl.u32 %v2413, 7
        %v2415 = vsub.s32 0, %v2414
        %v2416 = vrot.slane %v2366, %v2415
        %v2417 = vlaneseq
        %v2418 = vshrl.u32 %v2417, 7
        %v2419 = vsub.s32 0, %v2418
        %v2420 = vrot.slane %v2367, %v2419
        %v2421 = vlaneseq
        %v2422 = vshrl.u32 %v2421, 7
        %v2423 = vsub.s32 0, %v2422
        %v2424 = vrot.slane %v2368, %v2423
        %v2425 = vlaneseq
        %v2426 = vshrl.u32 %v2425, 7
        %v2427 = vsub.s32 0, %v2426
        %v2428 = vrot.slane %v2369, %v2427
        %v2429 = vlaneseq
        %v2430 = vshrl.u32 %v2429, 7
        %v2431 = vsub.s32 0, %v2430
        %v2432 = vrot.slane %v2370, %v2431
        %v2433 = vlaneseq
        %v2434 = vshrl.u32 %v2433, 7
        %v2435 = vsub.s32 0, %v2434
        %v2436 = vrot.slane %v2371, %v2435
        %v2437 = vlaneseq
        %v2438 = vshrl.u32 %v2437, 7
        %v2439 = vsub.s32 0, %v2438
        %v2440 = vrot.slane %v2372, %v2439
        %v2441 = vlaneseq
        %v2442 = vshrl.u32 %v2441, 7
        %v2443 = vsub.s32 0, %v2442
        %v2444 = vrot.slane %v2373, %v2443
        %v2445 = vlaneseq
        %v2446 = vshrl.u32 %v2445, 7
        %v2447 = vsub.s32 0, %v2446
        %v2448 = vrot.slane %v2374, %v2447
        %v2449 = vlaneseq
        %v2450 = vshrl.u32 %v2449, 7
        %v2451 = vsub.s32 0, %v2450
        %v2452 = vrot.slane %v2375, %v2451
        %v2453 = vlaneseq
        %v2454 = vshrl.u32 %v2453, 7
        %v2455 = vsub.s32 0, %v2454
        %v2456 = vrot.slane %v2376, %v2455
        %v2457 = vsel %vm1533, %v2400, %v2396
        %v2458 = vsel %vm1535, %v2404, %v2457
        %v2459 = vsel %vm1537, %v2408, %v2458
        %v2460 = vsel %vm1539, %v2412, %v2459
        %v2461 = vsel %vm1541, %v2416, %v2460
        %v2462 = vsel %vm1543, %v2420, %v2461
        %v2463 = vsel %vm1545, %v2424, %v2462
        %v2464 = vsel %vm1533, %v2432, %v2428
        %v2465 = vsel %vm1535, %v2436, %v2464
        %v2466 = vsel %vm1537, %v2440, %v2465
        %v2467 = vsel %vm1539, %v2444, %v2466
        %v2468 = vsel %vm1541, %v2448, %v2467
        %v2469 = vsel %vm1543, %v2452, %v2468
        %v2470 = vsel %vm1545, %v2456, %v2469
        %2473 = vst [vmem:[%s217] sm:$0xff] %v2463
        %2474 = vst [vmem:[%s217 + $0x8] sm:$0xff] %v2470
        %s2475 = sand.u32 %s137, 1
        %s2476 = scalar_lea.sflag [#allocation4], %s2475
        %s2477 = sand.u32 %s137, 1
        %s2478 = smul.addr %s2477, 16
        %s2479 = scalar_lea.vmem [#allocation3], %s2478
        // Predicated region
        $region41: #{features_detector_pallas.1} parent=39 // pred_check
          %p2480 = pneg %p147
        $region42: #{features_detector_pallas.1} parent=39 // pred_check_branch
          %2482 = sbr.rel (%p2480) target = $region44
        $region43: #{features_detector_pallas.1} parent=39 // pred_region
          %s2484 = ssub.s32 256, 256
          %2485 = vsyncadd %s2476, %s2484
          %s2486 = smul.addr %s19, 2
          %s2487 = smul.addr %s2486, 128
          %s2488 = scalar_lea.hbm %s5, %s2487
          %s2489 = sshll.u32 %s2479, 4
          %s2490 = int_to_ptr.vmem [resolvable:$true] %s2489
          %2495 = dma.vmem_to_hbm [thread:$0]  %s2490, 256, %s2488, %s2476, 128, 128, 8
        $region44: #{features_detector_pallas.1} parent=39 // pred_fallthru
          _
      $region40: #{features_detector_pallas.1} parent=5 // pred_fallthru
        _
      %p2496 = scmp.le.s32.totalorder 2, %s14
      // Predicated region
      $region45: #{features_detector_pallas.1} parent=5 // pred_check
        %p2497 = pneg %p2496
      $region46: #{features_detector_pallas.1} parent=5 // pred_check_branch
        %2499 = sbr.rel (%p2497) target = $region48
      $region47: #{features_detector_pallas.1} parent=5 // pred_region
        %s2500 = ssub.s32 %s14, 2
        // Predicated region
        $region49: #{features_detector_pallas.1} parent=47 // pred_check
          %p2501 = pneg %p153
        $region50: #{features_detector_pallas.1} parent=47 // pred_check_branch
          %2503 = sbr.rel (%p2501) target = $region52
        $region51: #{features_detector_pallas.1} parent=47 // pred_region
          %s2504 = sand.u32 %s138, 1
          %s2505 = scalar_lea.sflag [#allocation4], %s2504
          %s2506 = sand.u32 %s138, 1
          %s2507 = smul.addr %s2506, 16
          %s2508 = scalar_lea.vmem [#allocation3], %s2507
          %2509 = dma.done %s2505, 256
        $region52: #{features_detector_pallas.1} parent=47 // pred_fallthru
          _
      $region48: #{features_detector_pallas.1} parent=5 // pred_fallthru
        _
    $region6: #{features_detector_pallas.1} parent=1 // loop_footer
      %s18 = sadd.s32 1, %s14
    $region7: #{features_detector_pallas.1} parent=1 // loop_footer_branch
      %13 = sbr.rel target = $region3
    $region8: #{features_detector_pallas.1} parent=1 // loop_exit
      _
    %2510 = vsyncpa [#allocation4], 1
    %s2511 = scalar_lea.sflag [#allocation4], 1
    %2512 = vsyncpa %s2511, 1

</llo_original>
